<compile_context>
chip_gen: v7x
topology: tpu7x:2x2x1
jax: 0.10.0
libtpu: 0.0.40
codegen_flags: <defaults>
</compile_context>

<pallas_src>
import math
import functools

import jax
import jax.numpy as jnp
from jax.experimental import pallas as pl
from jax.experimental.pallas import tpu as pltpu


def _dac_kernel(rt_ps_ref, rt_pn_ref, q_ps_ref, k_ps_ref, q_pn_ref, k_pn_ref,
                o_ps_ref, o_pn_ref, *, scale_ps, scale_pn):
    """One grid step = one tile of BH rows; both attention branches fused."""

    def branch(q_ref, k_ref, rt_ref, o_ref, scale):
        # (tile_bh, m, E); fold the softmax scale into q (scales m*E elems, not m*m).
        q = q_ref[...].astype(jnp.float32) * scale
        k = k_ref[...].astype(jnp.float32)

        # scores[b, l, s] = sum_e q[b,l,e] * k[b,s,e]   (batched NT matmul on the MXU)
        s = jnp.einsum('ble,bse->bls', q, k, preferred_element_type=jnp.float32)

        # Max-stabilised softmax over the last axis; reciprocal goes to the EUP slot.
        s_max = jnp.max(s, axis=-1, keepdims=True)
        e = jnp.exp(s - s_max)
        denom = jnp.sum(e, axis=-1, keepdims=True)
        attn = e * pl.reciprocal(denom, approx=False)          # (tile_bh, m, m)

        tbh, m, _ = attn.shape
        nlanes = rt_ref.shape[1]                               # rep * win

        # Fused einops repeat 'b m n -> b (m p) (n p)': BOTH repeats in ONE matmul.
        #   out[b, l, rr*win + v] = attn[b, l, v // rep]  =  (attn @ RT)[b, l, rr*win+v]
        # with RT[s, rr*win + v] = 1 iff v // rep == s (built once in the wrapper).
        # The row repeat (rr) lives in the lane dim, so there is no K=rep second
        # matmul and the store is rep-times lane-denser than a (win, win) store.
        rb = jnp.broadcast_to(rt_ref[...][None], (tbh, m, nlanes))
        # TODO(synk): fold the batch into the MXU M dim with a shared (non-broadcast)
        # RT once Mosaic's rank-3 x rank-2 dot / minor-dim reshape is verified on
        # this toolchain; the batched form below is the proven-lowering path.
        out = jnp.einsum('bls,bsv->blv', attn, rb,
                         preferred_element_type=jnp.float32)   # (tile_bh, m, rep*win)
        o_ref[0] = out.astype(o_ref.dtype)

    branch(q_ps_ref, k_ps_ref, rt_ps_ref, o_ps_ref, scale_ps)
    branch(q_pn_ref, k_pn_ref, rt_pn_ref, o_pn_ref, scale_pn)


def _expansion_matrix(m, rep, win):
    """RT[s, rr*win + v] = 1.0 iff v // rep == s.  Shape (m, rep*win), float32."""
    v = jnp.arange(win, dtype=jnp.int32)
    s = jnp.arange(m, dtype=jnp.int32)
    rt = (v[None, :] // rep == s[:, None]).astype(jnp.float32)   # (m, win)
    return jnp.tile(rt, (1, rep))                                # (m, rep*win)


def _vmem_capacity_bytes():
    try:
        return int(pltpu.get_tpu_info().vmem_capacity_bytes)
    except Exception:              # interpret mode / unknown chip
        return 64 * 1024 * 1024    # v7x per-core VMEM: the most conservative target


def _auto_tile_bh(bh, per_bh_pipe_bytes, per_bh_tmp_bytes, budget_bytes):
    """Largest divisor of BH whose double-buffered I/O + live temporaries fit."""
    best = 1
    for d in range(1, bh + 1):
        if bh % d:
            continue
        if d * (2 * per_bh_pipe_bytes + per_bh_tmp_bytes) <= budget_bytes:
            best = d
    return best


def dac_structure_forward(queries_patch_size, keys_patch_size,
                          queries_patch_num, keys_patch_num,
                          patch_index, *, win_size, patch_size_list, scale=None,
                          tile_bh=None):
    """JAX/Pallas equivalent of DACStructure.forward (eval mode)."""
    B, L_ps, H, E_ps = queries_patch_size.shape
    _, L_pn, _, E_pn = queries_patch_num.shape
    BH = B * H
    p = patch_size_list[patch_index]
    num_patches = win_size // p
    rep_ps, rep_pn = p, num_patches
    scale_ps = scale if scale is not None else 1.0 / math.sqrt(E_ps)
    scale_pn = scale if scale is not None else 1.0 / math.sqrt(E_pn)
    n_ps = rep_ps * win_size          # lane width of the patch_size output blocks
    n_pn = rep_pn * win_size          # lane width of the patch_num  output blocks

    # (B, L, H, E) -> (B*H, L, E): tiny copy; keeps every in-kernel einsum in the
    # leading-batch-dim form Mosaic lowers cleanly.
    def to_bh(x):
        return jnp.transpose(x, (0, 2, 1, 3)).reshape(BH, x.shape[1], x.shape[3])

    qf_ps, kf_ps = to_bh(queries_patch_size), to_bh(keys_patch_size)
    qf_pn, kf_pn = to_bh(queries_patch_num), to_bh(keys_patch_num)

    # 0/1 expansion matrices, built once here (not per grid step); constant block
    # index across the grid means they are fetched into VMEM once.
    rt_ps = _expansion_matrix(L_ps, rep_ps, win_size)     # (L_ps, rep_ps*win)
    rt_pn = _expansion_matrix(L_pn, rep_pn, win_size)     # (L_pn, rep_pn*win)

    # --- VMEM budgeting: choose tile_bh per generation. ---
    itemsize = 4
    per_bh_pipe = itemsize * (2 * L_ps * E_ps + 2 * L_pn * E_pn        # q/k tiles
                              + L_ps * n_ps + L_pn * n_pn)             # output tiles
    per_bh_tmp = itemsize * (2 * (L_ps * n_ps + L_pn * n_pn)           # rb + out values
                             + 4 * (L_ps * L_ps + L_pn * L_pn))        # scores/exp/attn
    vmem_cap = _vmem_capacity_bytes()
    if tile_bh is None:
        tile_bh = _auto_tile_bh(BH, per_bh_pipe, per_bh_tmp, vmem_cap // 2)
    assert BH % tile_bh == 0, "tile_bh must divide B*H"
    num_tiles = BH // tile_bh
    vmem_limit = int(min(vmem_cap * 0.9,
                         max(32 * 1024 * 1024,
                             2 * tile_bh * (2 * per_bh_pipe + per_bh_tmp))))

    out_ps, out_pn = pl.pallas_call(
        functools.partial(_dac_kernel, scale_ps=scale_ps, scale_pn=scale_pn),
        out_shape=(jax.ShapeDtypeStruct((num_tiles, tile_bh, L_ps, n_ps), jnp.float32),
                   jax.ShapeDtypeStruct((num_tiles, tile_bh, L_pn, n_pn), jnp.float32)),
        grid=(num_tiles,),
        in_specs=[
            pl.BlockSpec((L_ps, n_ps), lambda i: (0, 0)),              # rt_ps (shared)
            pl.BlockSpec((L_pn, n_pn), lambda i: (0, 0)),              # rt_pn (shared)
            pl.BlockSpec((tile_bh, L_ps, E_ps), lambda i: (i, 0, 0)),  # q_ps
            pl.BlockSpec((tile_bh, L_ps, E_ps), lambda i: (i, 0, 0)),  # k_ps
            pl.BlockSpec((tile_bh, L_pn, E_pn), lambda i: (i, 0, 0)),  # q_pn
            pl.BlockSpec((tile_bh, L_pn, E_pn), lambda i: (i, 0, 0)),  # k_pn
        ],
        out_specs=[
            pl.BlockSpec((1, tile_bh, L_ps, n_ps), lambda i: (i, 0, 0, 0)),
            pl.BlockSpec((1, tile_bh, L_pn, n_pn), lambda i: (i, 0, 0, 0)),
        ],
        compiler_params=pltpu.CompilerParams(
            dimension_semantics=("parallel",),          # megacore-shardable axis
            vmem_limit_bytes=vmem_limit),
    )(rt_ps, rt_pn, qf_ps, kf_ps, qf_pn, kf_pn)

    # TODO(synk): nn.Dropout(attention_dropout) is identity (eval mode); PyTorch's
    # RNG-based dropout mask is not reproduced.
    # TODO(synk): emit bf16 outputs if the downstream KL terms tolerate it (halves
    # the dominant HBM writeback; biggest relative win on v5e).

    # (num_tiles, tile_bh, L, rep*win) flattens contiguously to (B, H, win, win):
    # row order is (tile, bh_in_tile, l); lane order is (rr, v) with w = l*rep + rr.
    series_ps = out_ps.reshape(B, H, win_size, win_size)
    series_pn = out_pn.reshape(B, H, win_size, win_size)
    return series_ps, series_pn


def _reference(queries_patch_size, keys_patch_size, queries_patch_num, keys_patch_num,
               patch_index, *, win_size, patch_size_list, scale=None):
    """Pure-jnp reference mirroring the torch forward (eval mode)."""
    def branch(q, k):
        sc = scale if scale is not None else 1.0 / math.sqrt(q.shape[-1])
        scores = jnp.einsum('blhe,bshe->bhls', q, k)
        return jax.nn.softmax(sc * scores, axis=-1)

    p = patch_size_list[patch_index]
    n = win_size // p
    s_ps = branch(queries_patch_size, keys_patch_size)
    s_pn = branch(queries_patch_num, keys_patch_num)
    s_ps = jnp.repeat(jnp.repeat(s_ps, p, axis=2), p, axis=3)
    s_pn = jnp.repeat(jnp.repeat(s_pn, n, axis=2), n, axis=3)
    return s_ps, s_pn


if __name__ == "__main__":
    # Module config (no learnable parameters in DACStructure itself).
    win_size = 16
    patch_size_list = [2, 4]
    patch_index = 0
    channel = 4           # unused in forward, kept for parity with __init__
    B, H, E = 2, 4, 32

    current_p = patch_size_list[patch_index]          # 2
    L_ps = win_size // current_p                      # 8  (num patches)
    L_pn = current_p                                  # 2  (patch size)

    key = jax.random.PRNGKey(0)
    k1, k2, k3, k4 = jax.random.split(key, 4)
    queries_patch_size = jax.random.normal(k1, (B, L_ps, H, E), dtype=jnp.float32)
    keys_patch_size    = jax.random.normal(k2, (B, L_ps, H, E), dtype=jnp.float32)
    queries_patch_num  = jax.random.normal(k3, (B, L_pn, H, E), dtype=jnp.float32)
    keys_patch_num     = jax.random.normal(k4, (B, L_pn, H, E), dtype=jnp.float32)

    ref_ps, ref_pn = _reference(
        queries_patch_size, keys_patch_size, queries_patch_num, keys_patch_num,
        patch_index, win_size=win_size, patch_size_list=patch_size_list)

    # tile_bh=None -> auto VMEM-budgeted tile (single grid step at these toy sizes);
    # tile_bh=2    -> forced 4-step pipelined grid to exercise the tiled path.
    for forced_tile in (None, 2):
        series_ps, series_pn = dac_structure_forward(
            queries_patch_size, keys_patch_size, queries_patch_num, keys_patch_num,
            patch_index, win_size=win_size, patch_size_list=patch_size_list,
            tile_bh=forced_tile)
        jax.block_until_ready((series_ps, series_pn))

        assert series_ps.shape == (B, H, win_size, win_size)
        assert series_pn.shape == (B, H, win_size, win_size)
        assert jnp.allclose(series_ps, ref_ps, atol=1e-5, rtol=1e-5)
        assert jnp.allclose(series_pn, ref_pn, atol=1e-5, rtol=1e-5)

    print("KERNEL_OK")
</pallas_src>

<mosaic_0001>
module attributes {stable_mosaic.version = 11 : i64} {
  func.func @_dac_kernel(%arg0: i32, %arg1: memref<8x32xf32, #tpu.memory_space<vmem>>, %arg2: memref<2x128xf32, #tpu.memory_space<vmem>>, %arg3: memref<8x8x32xf32, #tpu.memory_space<vmem>>, %arg4: memref<8x8x32xf32, #tpu.memory_space<vmem>>, %arg5: memref<8x2x32xf32, #tpu.memory_space<vmem>>, %arg6: memref<8x2x32xf32, #tpu.memory_space<vmem>>, %arg7: memref<1x8x8x32xf32, #tpu.memory_space<vmem>>, %arg8: memref<1x8x2x128xf32, #tpu.memory_space<vmem>>) attributes {dimension_semantics = [#tpu.dimension_semantics<parallel>], iteration_bounds = array<i64: 1>, scalar_prefetch = 0 : i64, scratch_operands = 0 : i64, tpu.core_type = #tpu.core_type<tc>, window_params = [{pipeline_mode = #tpu.pipeline_mode<synchronous>, transform_indices = @transform_0, window_bounds = array<i64: 8, 32>}, {pipeline_mode = #tpu.pipeline_mode<synchronous>, transform_indices = @transform_1, window_bounds = array<i64: 2, 128>}, {transform_indices = @transform_2, window_bounds = array<i64: 8, 8, 32>}, {transform_indices = @transform_3, window_bounds = array<i64: 8, 8, 32>}, {transform_indices = @transform_4, window_bounds = array<i64: 8, 2, 32>}, {transform_indices = @transform_5, window_bounds = array<i64: 8, 2, 32>}, {transform_indices = @transform_6, window_bounds = array<i64: 1, 8, 8, 32>}, {transform_indices = @transform_7, window_bounds = array<i64: 1, 8, 2, 128>}]} {
    %c0 = arith.constant 0 : index
    %c0_0 = arith.constant 0 : index
    %c0_1 = arith.constant 0 : index
    %0 = vector.load %arg3[%c0, %c0_0, %c0_1] : memref<8x8x32xf32, #tpu.memory_space<vmem>>, vector<8x8x32xf32>
    %cst = arith.constant 0.176776692 : f32
    %1 = vector.broadcast %cst : f32 to vector<8x8x32xf32>
    %2 = arith.mulf %0, %1 : vector<8x8x32xf32>
    %c0_2 = arith.constant 0 : index
    %c0_3 = arith.constant 0 : index
    %c0_4 = arith.constant 0 : index
    %3 = vector.load %arg4[%c0_2, %c0_3, %c0_4] : memref<8x8x32xf32, #tpu.memory_space<vmem>>, vector<8x8x32xf32>
    "tpu.trace_start"() <{level = 10 : i32, message = "ble,bse->bls"}> : () -> ()
    %cst_5 = arith.constant dense<0.000000e+00> : vector<8x8x8xf32>
    %4 = tpu.matmul %2, %3, %cst_5 {dimension_numbers = #tpu.dot_dimension_numbers<[2], [2], [1], [1], [0, 0, 0, 1, 1, 1], [0], [0]>} : vector<8x8x32xf32>, vector<8x8x32xf32>, vector<8x8x8xf32> -> vector<8x8x8xf32>
    "tpu.trace_stop"() : () -> ()
    %cst_6 = arith.constant dense<0xFF800000> : vector<8x8xf32>
    %5 = vector.multi_reduction <maximumf>, %4, %cst_6 [2] : vector<8x8x8xf32> to vector<8x8xf32>
    %6 = vector.shape_cast %5 : vector<8x8xf32> to vector<8x8x1xf32>
    %7 = vector.broadcast %6 : vector<8x8x1xf32> to vector<8x8x8xf32>
    %8 = arith.subf %4, %7 : vector<8x8x8xf32>
    %9 = math.exp %8 : vector<8x8x8xf32>
    %cst_7 = arith.constant dense<0.000000e+00> : vector<8x8xf32>
    %10 = vector.multi_reduction <add>, %9, %cst_7 [2] : vector<8x8x8xf32> to vector<8x8xf32>
    %11 = vector.shape_cast %10 : vector<8x8xf32> to vector<8x8x1xf32>
    %12 = tpu.reciprocal %11 : vector<8x8x1xf32> -> vector<8x8x1xf32>
    %13 = vector.broadcast %12 : vector<8x8x1xf32> to vector<8x8x8xf32>
    %14 = arith.mulf %9, %13 : vector<8x8x8xf32>
    %c0_8 = arith.constant 0 : index
    %c0_9 = arith.constant 0 : index
    %15 = vector.load %arg1[%c0_8, %c0_9] : memref<8x32xf32, #tpu.memory_space<vmem>>, vector<8x32xf32>
    %16 = vector.shape_cast %15 : vector<8x32xf32> to vector<1x8x32xf32>
    %17 = vector.shape_cast %16 : vector<1x8x32xf32> to vector<1x8x32xf32>
    %18 = vector.broadcast %17 : vector<1x8x32xf32> to vector<8x8x32xf32>
    "tpu.trace_start"() <{level = 10 : i32, message = "bls,bsv->blv"}> : () -> ()
    %cst_10 = arith.constant dense<0.000000e+00> : vector<8x8x32xf32>
    %19 = tpu.matmul %14, %18, %cst_10 {dimension_numbers = #tpu.dot_dimension_numbers<[2], [1], [1], [2], [0, 0, 0, 1, 1, 2], [0], [0]>} : vector<8x8x8xf32>, vector<8x8x32xf32>, vector<8x8x32xf32> -> vector<8x8x32xf32>
    "tpu.trace_stop"() : () -> ()
    %c0_11 = arith.constant 0 : index
    %c0_12 = arith.constant 0 : index
    %c0_13 = arith.constant 0 : index
    %c0_14 = arith.constant 0 : index
    %20 = vector.load %arg7[%c0_11, %c0_12, %c0_13, %c0_14] : memref<1x8x8x32xf32, #tpu.memory_space<vmem>>, vector<1x8x8x32xf32>
    %21 = vector.shape_cast %20 : vector<1x8x8x32xf32> to vector<8x8x32xf32>
    %22 = vector.shape_cast %19 : vector<8x8x32xf32> to vector<1x8x8x32xf32>
    tpu.vector_store %arg7[%c0_11, %c0_12, %c0_13, %c0_14], %22 {strides = array<i32>} : memref<1x8x8x32xf32, #tpu.memory_space<vmem>>, vector<1x8x8x32xf32>,
    %c0_15 = arith.constant 0 : index
    %c0_16 = arith.constant 0 : index
    %c0_17 = arith.constant 0 : index
    %23 = vector.load %arg5[%c0_15, %c0_16, %c0_17] : memref<8x2x32xf32, #tpu.memory_space<vmem>>, vector<8x2x32xf32>
    %cst_18 = arith.constant 0.176776692 : f32
    %24 = vector.broadcast %cst_18 : f32 to vector<8x2x32xf32>
    %25 = arith.mulf %23, %24 : vector<8x2x32xf32>
    %c0_19 = arith.constant 0 : index
    %c0_20 = arith.constant 0 : index
    %c0_21 = arith.constant 0 : index
    %26 = vector.load %arg6[%c0_19, %c0_20, %c0_21] : memref<8x2x32xf32, #tpu.memory_space<vmem>>, vector<8x2x32xf32>
    "tpu.trace_start"() <{level = 10 : i32, message = "ble,bse->bls"}> : () -> ()
    %cst_22 = arith.constant dense<0.000000e+00> : vector<8x2x2xf32>
    %27 = tpu.matmul %25, %26, %cst_22 {dimension_numbers = #tpu.dot_dimension_numbers<[2], [2], [1], [1], [0, 0, 0, 1, 1, 1], [0], [0]>} : vector<8x2x32xf32>, vector<8x2x32xf32>, vector<8x2x2xf32> -> vector<8x2x2xf32>
    "tpu.trace_stop"() : () -> ()
    %cst_23 = arith.constant dense<0xFF800000> : vector<8x2xf32>
    %28 = vector.multi_reduction <maximumf>, %27, %cst_23 [2] : vector<8x2x2xf32> to vector<8x2xf32>
    %29 = vector.shape_cast %28 : vector<8x2xf32> to vector<8x2x1xf32>
    %30 = vector.broadcast %29 : vector<8x2x1xf32> to vector<8x2x2xf32>
    %31 = arith.subf %27, %30 : vector<8x2x2xf32>
    %32 = math.exp %31 : vector<8x2x2xf32>
    %cst_24 = arith.constant dense<0.000000e+00> : vector<8x2xf32>
    %33 = vector.multi_reduction <add>, %32, %cst_24 [2] : vector<8x2x2xf32> to vector<8x2xf32>
    %34 = vector.shape_cast %33 : vector<8x2xf32> to vector<8x2x1xf32>
    %35 = tpu.reciprocal %34 : vector<8x2x1xf32> -> vector<8x2x1xf32>
    %36 = vector.broadcast %35 : vector<8x2x1xf32> to vector<8x2x2xf32>
    %37 = arith.mulf %32, %36 : vector<8x2x2xf32>
    %c0_25 = arith.constant 0 : index
    %c0_26 = arith.constant 0 : index
    %38 = vector.load %arg2[%c0_25, %c0_26] : memref<2x128xf32, #tpu.memory_space<vmem>>, vector<2x128xf32>
    %39 = vector.shape_cast %38 : vector<2x128xf32> to vector<1x2x128xf32>
    %40 = vector.shape_cast %39 : vector<1x2x128xf32> to vector<1x2x128xf32>
    %41 = vector.broadcast %40 : vector<1x2x128xf32> to vector<8x2x128xf32>
    "tpu.trace_start"() <{level = 10 : i32, message = "bls,bsv->blv"}> : () -> ()
    %cst_27 = arith.constant dense<0.000000e+00> : vector<8x2x128xf32>
    %42 = tpu.matmul %37, %41, %cst_27 {dimension_numbers = #tpu.dot_dimension_numbers<[2], [1], [1], [2], [0, 0, 0, 1, 1, 2], [0], [0]>} : vector<8x2x2xf32>, vector<8x2x128xf32>, vector<8x2x128xf32> -> vector<8x2x128xf32>
    "tpu.trace_stop"() : () -> ()
    %c0_28 = arith.constant 0 : index
    %c0_29 = arith.constant 0 : index
    %c0_30 = arith.constant 0 : index
    %c0_31 = arith.constant 0 : index
    %43 = vector.load %arg8[%c0_28, %c0_29, %c0_30, %c0_31] : memref<1x8x2x128xf32, #tpu.memory_space<vmem>>, vector<1x8x2x128xf32>
    %44 = vector.shape_cast %43 : vector<1x8x2x128xf32> to vector<8x2x128xf32>
    %45 = vector.shape_cast %42 : vector<8x2x128xf32> to vector<1x8x2x128xf32>
    tpu.vector_store %arg8[%c0_28, %c0_29, %c0_30, %c0_31], %45 {strides = array<i32>} : memref<1x8x2x128xf32, #tpu.memory_space<vmem>>, vector<1x8x2x128xf32>,
    return
  }
  func.func @transform_0(%arg0: i32) -> (i32, i32) {
    %c0_i32 = arith.constant 0 : i32
    %c0_i32_0 = arith.constant 0 : i32
    %c0_i32_1 = arith.constant 0 : i32
    return %c0_i32, %c0_i32_0 : i32, i32
  }
  func.func @transform_1(%arg0: i32) -> (i32, i32) {
    %c0_i32 = arith.constant 0 : i32
    %c0_i32_0 = arith.constant 0 : i32
    %c0_i32_1 = arith.constant 0 : i32
    return %c0_i32, %c0_i32_0 : i32, i32
  }
  func.func @transform_2(%arg0: i32) -> (i32, i32, i32) {
    %c0_i32 = arith.constant 0 : i32
    %c0_i32_0 = arith.constant 0 : i32
    %c0_i32_1 = arith.constant 0 : i32
    return %arg0, %c0_i32, %c0_i32_0 : i32, i32, i32
  }
  func.func @transform_3(%arg0: i32) -> (i32, i32, i32) {
    %c0_i32 = arith.constant 0 : i32
    %c0_i32_0 = arith.constant 0 : i32
    %c0_i32_1 = arith.constant 0 : i32
    return %arg0, %c0_i32, %c0_i32_0 : i32, i32, i32
  }
  func.func @transform_4(%arg0: i32) -> (i32, i32, i32) {
    %c0_i32 = arith.constant 0 : i32
    %c0_i32_0 = arith.constant 0 : i32
    %c0_i32_1 = arith.constant 0 : i32
    return %arg0, %c0_i32, %c0_i32_0 : i32, i32, i32
  }
  func.func @transform_5(%arg0: i32) -> (i32, i32, i32) {
    %c0_i32 = arith.constant 0 : i32
    %c0_i32_0 = arith.constant 0 : i32
    %c0_i32_1 = arith.constant 0 : i32
    return %arg0, %c0_i32, %c0_i32_0 : i32, i32, i32
  }
  func.func @transform_6(%arg0: i32) -> (i32, i32, i32, i32) {
    %c0_i32 = arith.constant 0 : i32
    %c0_i32_0 = arith.constant 0 : i32
    %c0_i32_1 = arith.constant 0 : i32
    %c0_i32_2 = arith.constant 0 : i32
    return %arg0, %c0_i32, %c0_i32_0, %c0_i32_1 : i32, i32, i32, i32
  }
  func.func @transform_7(%arg0: i32) -> (i32, i32, i32, i32) {
    %c0_i32 = arith.constant 0 : i32
    %c0_i32_0 = arith.constant 0 : i32
    %c0_i32_1 = arith.constant 0 : i32
    %c0_i32_2 = arith.constant 0 : i32
    return %arg0, %c0_i32, %c0_i32_0, %c0_i32_1 : i32, i32, i32, i32
  }
}

</mosaic_0001>

<llo_original>
// kernel: tpu_custom_call.1
$region0: #{tpu_custom_call.1}
  #allocation0 [shape = 'u32[]', space=smem, size = 0x4, offset = 0x4, fixed_abs, tag = 'smem constant byte address 0x4 - core index']
  #allocation1 [shape = 'u32[144,128]{1,0:T(1,128)}', space=vmem, size = 0x12000, scoped, tag = 'internal scratch']
  %s0 = inlined_call_operand.hbm [shape: f32[8,32], index: 0, kind: input, shape index: {}]
  %s1 = inlined_call_operand.vmem [shape: f32[2,128], index: 1, kind: input, shape index: {}]
  %s2 = inlined_call_operand.hbm [shape: f32[8,8,32], index: 2, kind: input, shape index: {}]
  %s3 = inlined_call_operand.hbm [shape: f32[8,8,32], index: 3, kind: input, shape index: {}]
  %s4 = inlined_call_operand.hbm [shape: f32[8,2,32], index: 4, kind: input, shape index: {}]
  %s5 = inlined_call_operand.vmem [shape: f32[8,2,32], index: 5, kind: input, shape index: {}]
  %s6 = inlined_call_operand.hbm [shape: f32[1,8,8,32], index: 6, kind: output, shape index: {0}]
  %s7 = inlined_call_operand.hbm [shape: f32[1,8,2,128], index: 7, kind: output, shape index: {1}]
  %8 = xla_tuple %s6, %s7
  %s9 = sld [smem:[#allocation0]]
  $region58: #{tpu_custom_call.1} parent=0
    _
  %s11 = ssub.s32 1, %s9
  %s12 = scalar_select 0, %s11, %s9
  $region1: #{tpu_custom_call.1} parent=0
    #allocation2 [shape = 'u8[4096]{0}', space=vmem, size = 0x1000, scoped, tag = 'input window, operand 0, single buffered']
    #allocation3 [shape = 's32[1]{0}', space=sflag, size = 0x4, scoped, tag = 'scoped memory for tpu_custom_call.1']
    #allocation4 [shape = 's32[1]{0}', space=sflag, size = 0x4, scoped, tag = 'scoped memory for tpu_custom_call.1']
    #allocation5 [shape = 'u8[32768]{0}', space=vmem, size = 0x8000, scoped, tag = 'input window, operand 2, single buffered']
    #allocation6 [shape = 's32[1]{0}', space=sflag, size = 0x4, scoped, tag = 'scoped memory for tpu_custom_call.1']
    #allocation7 [shape = 'u8[32768]{0}', space=vmem, size = 0x8000, scoped, tag = 'input window, operand 3, single buffered']
    #allocation8 [shape = 'u8[8192]{0}', space=vmem, size = 0x2000, scoped, tag = 'input window, operand 4, single buffered']
    #allocation9 [shape = 's32[1]{0}', space=sflag, size = 0x4, scoped, tag = 'scoped memory for tpu_custom_call.1']
    #allocation10 [shape = 'u8[32768]{0}', space=vmem, size = 0x8000, scoped, tag = 'output window, operand 0, single buffered']
    #allocation11 [shape = 'u8[8192]{0}', space=vmem, size = 0x2000, scoped, tag = 'output window, operand 1, single buffered']
    #allocation12 [shape = 's32[1]{0}', space=sflag, size = 0x4, scoped, tag = 'scoped memory for tpu_custom_call.1']
    %13 = vsyncpa [#allocation3], 0
    %14 = vsyncpa [#allocation6], 0
    %15 = vsyncpa [#allocation9], 0
    %16 = vsyncpa [#allocation4], 0
    %17 = vsyncpa [#allocation12], 0
    // Predicated region
    $region2: #{tpu_custom_call.1} parent=1 // pred_check
      _
    $region3: #{tpu_custom_call.1} parent=1 // pred_check_branch
      %19 = sbr.rel (0) target = $region5
    $region4: #{tpu_custom_call.1} parent=1 // pred_region
      %s21 = ssub.s32 128, 128
      %22 = vsyncadd [#allocation3], %s21
      %s24 = sshll.u32 [#allocation2], 4
      %s25 = int_to_ptr.vmem [resolvable:$true] %s24
      %27 = dma.hbm_to_vmem [thread:$0]  %s0, 128, %s25, [#allocation3]
    $region5: #{tpu_custom_call.1} parent=1 // pred_fallthru
      _
    // Predicated region
    $region6: #{tpu_custom_call.1} parent=1 // pred_check
      _
    $region7: #{tpu_custom_call.1} parent=1 // pred_check_branch
      %29 = sbr.rel (0) target = $region9
    $region8: #{tpu_custom_call.1} parent=1 // pred_region
      _
    $region9: #{tpu_custom_call.1} parent=1 // pred_fallthru
      _
    // Predicated region
    $region10: #{tpu_custom_call.1} parent=1 // pred_check
      _
    $region11: #{tpu_custom_call.1} parent=1 // pred_check_branch
      %31 = sbr.rel (0) target = $region13
    $region12: #{tpu_custom_call.1} parent=1 // pred_region
      %s33 = ssub.s32 1024, 1024
      %34 = vsyncadd [#allocation6], %s33
      %s35 = sshll.u32 [#allocation5], 4
      %s36 = int_to_ptr.vmem [resolvable:$true] %s35
      %41 = dma.hbm_to_vmem [thread:$0]  %s2, 1024, %s36, [#allocation6], 128, 128, 8
    $region13: #{tpu_custom_call.1} parent=1 // pred_fallthru
      _
    // Predicated region
    $region14: #{tpu_custom_call.1} parent=1 // pred_check
      _
    $region15: #{tpu_custom_call.1} parent=1 // pred_check_branch
      %43 = sbr.rel (0) target = $region17
    $region16: #{tpu_custom_call.1} parent=1 // pred_region
      %s45 = ssub.s32 1024, 1024
      %46 = vsyncadd [#allocation6], %s45
      %s47 = sshll.u32 [#allocation7], 4
      %s48 = int_to_ptr.vmem [resolvable:$true] %s47
      %53 = dma.hbm_to_vmem [thread:$0]  %s3, 1024, %s48, [#allocation6], 128, 128, 8
    $region17: #{tpu_custom_call.1} parent=1 // pred_fallthru
      _
    // Predicated region
    $region18: #{tpu_custom_call.1} parent=1 // pred_check
      _
    $region19: #{tpu_custom_call.1} parent=1 // pred_check_branch
      %55 = sbr.rel (0) target = $region21
    $region20: #{tpu_custom_call.1} parent=1 // pred_region
      %s57 = ssub.s32 256, 256
      %58 = vsyncadd [#allocation9], %s57
      %s59 = sshll.u32 [#allocation8], 4
      %s60 = int_to_ptr.vmem [resolvable:$true] %s59
      %65 = dma.hbm_to_vmem [thread:$0]  %s4, 256, %s60, [#allocation9], 32, 32, 2
    $region21: #{tpu_custom_call.1} parent=1 // pred_fallthru
      _
    // Predicated region
    $region22: #{tpu_custom_call.1} parent=1 // pred_check
      _
    $region23: #{tpu_custom_call.1} parent=1 // pred_check_branch
      %67 = sbr.rel (0) target = $region25
    $region24: #{tpu_custom_call.1} parent=1 // pred_region
      _
    $region25: #{tpu_custom_call.1} parent=1 // pred_fallthru
      _
    // Predicated region
    $region26: #{tpu_custom_call.1} parent=1 // pred_check
      _
    $region27: #{tpu_custom_call.1} parent=1 // pred_check_branch
      %69 = sbr.rel (0) target = $region29
    $region28: #{tpu_custom_call.1} parent=1 // pred_region
      %70 = dma.done [#allocation3], 128
    $region29: #{tpu_custom_call.1} parent=1 // pred_fallthru
      _
    // Predicated region
    $region30: #{tpu_custom_call.1} parent=1 // pred_check
      _
    $region31: #{tpu_custom_call.1} parent=1 // pred_check_branch
      %72 = sbr.rel (0) target = $region33
    $region32: #{tpu_custom_call.1} parent=1 // pred_region
      %73 = dma.done [#allocation6], 1024
    $region33: #{tpu_custom_call.1} parent=1 // pred_fallthru
      _
    // Predicated region
    $region34: #{tpu_custom_call.1} parent=1 // pred_check
      _
    $region35: #{tpu_custom_call.1} parent=1 // pred_check_branch
      %75 = sbr.rel (0) target = $region37
    $region36: #{tpu_custom_call.1} parent=1 // pred_region
      %76 = dma.done [#allocation6], 1024
    $region37: #{tpu_custom_call.1} parent=1 // pred_fallthru
      _
    // Predicated region
    $region38: #{tpu_custom_call.1} parent=1 // pred_check
      _
    $region39: #{tpu_custom_call.1} parent=1 // pred_check_branch
      %78 = sbr.rel (0) target = $region41
    $region40: #{tpu_custom_call.1} parent=1 // pred_region
      %79 = dma.done [#allocation9], 256
    $region41: #{tpu_custom_call.1} parent=1 // pred_fallthru
      _
    %v80 = vld [vmem:[#allocation5] sm:$0xff]
    %v81 = vld [vmem:[#allocation5 + $0x8] sm:$0xff]
    %v82 = vld [vmem:[#allocation5 + $0x10] sm:$0xff]
    %v83 = vld [vmem:[#allocation5 + $0x18] sm:$0xff]
    %v84 = vld [vmem:[#allocation5 + $0x20] sm:$0xff]
    %v85 = vld [vmem:[#allocation5 + $0x28] sm:$0xff]
    %v86 = vld [vmem:[#allocation5 + $0x30] sm:$0xff]
    %v87 = vld [vmem:[#allocation5 + $0x38] sm:$0xff]
    %v88 = vmul.f32 %v80, 0.17677669
    %v89 = vmul.f32 %v81, 0.17677669
    %v90 = vmul.f32 %v82, 0.17677669
    %v91 = vmul.f32 %v83, 0.17677669
    %v92 = vmul.f32 %v84, 0.17677669
    %v93 = vmul.f32 %v85, 0.17677669
    %v94 = vmul.f32 %v86, 0.17677669
    %v95 = vmul.f32 %v87, 0.17677669
    %v96 = vld [vmem:[#allocation7] sm:$0xff]
    %v97 = vld [vmem:[#allocation7 + $0x8] sm:$0xff]
    %v98 = vld [vmem:[#allocation7 + $0x10] sm:$0xff]
    %v99 = vld [vmem:[#allocation7 + $0x18] sm:$0xff]
    %v100 = vld [vmem:[#allocation7 + $0x20] sm:$0xff]
    %v101 = vld [vmem:[#allocation7 + $0x28] sm:$0xff]
    %v102 = vld [vmem:[#allocation7 + $0x30] sm:$0xff]
    %v103 = vld [vmem:[#allocation7 + $0x38] sm:$0xff]
    %vm104 = vcmask 261120
    %v106 = vsel %vm104, %v88, 0
    %v109 = vsel %vm104, %v96, 0
    %111 = vmatprep.subr.mxu0 0.0
    %112 = vmatpush1.xpose.msra.mxu0 %v109
    %113 = vmatprep.subr.mxu0 0.0
    %114 = vmatpush1.xpose.msra.mxu0 0.0
    %115 = vmatprep.subr.mxu0 0.0
    %116 = vmatpush1.xpose.msra.mxu0 0.0
    %117 = vmatprep.subr.mxu0 0.0
    %118 = vmatpush1.xpose.msra.mxu0 0.0
    %119 = vmatprep.subr.mxu0 0.0
    %120 = vmatpush1.xpose.msra.mxu0 0.0
    %121 = vmatprep.subr.mxu0 0.0
    %122 = vmatpush1.xpose.msra.mxu0 0.0
    %123 = vmatprep.subr.mxu0 0.0
    %124 = vmatpush1.xpose.msra.mxu0 0.0
    %125 = vmatprep.subr.mxu0 0.0
    %126 = vmatpush1.xpose.msra.mxu0 0.0
    %127 = vmatprep.subr.mxu0 0.0
    %128 = vmatpush1.xpose.msra.mxu0 0.0
    %129 = vmatprep.subr.mxu0 0.0
    %130 = vmatpush1.xpose.msra.mxu0 0.0
    %131 = vmatprep.subr.mxu0 0.0
    %132 = vmatpush1.xpose.msra.mxu0 0.0
    %133 = vmatprep.subr.mxu0 0.0
    %134 = vmatpush1.xpose.msra.mxu0 0.0
    %135 = vmatprep.subr.mxu0 0.0
    %136 = vmatpush1.xpose.msra.mxu0 0.0
    %137 = vmatprep.subr.mxu0 0.0
    %138 = vmatpush1.xpose.msra.mxu0 0.0
    %139 = vmatprep.subr.mxu0 0.0
    %140 = vmatpush1.xpose.msra.mxu0 0.0
    %141 = vmatprep.subr.mxu0 0.0
    %142 = vmatpush1.xpose.msra.mxu0 0.0
    %143 = vmatprep.subr.mxu0 0.0
    %144 = vmatpush1.xpose.msra.mxu0 0.0
    %145 = vmatprep.subr.mxu0 0.0
    %146 = vmatpush1.xpose.msra.mxu0 0.0
    %147 = vmatprep.subr.mxu0 0.0
    %148 = vmatpush1.xpose.msra.mxu0 0.0
    %149 = vmatprep.subr.mxu0 0.0
    %150 = vmatpush1.xpose.msra.mxu0 0.0
    %151 = vmatprep.subr.mxu0 0.0
    %152 = vmatpush1.xpose.msra.mxu0 0.0
    %153 = vmatprep.subr.mxu0 0.0
    %154 = vmatpush1.xpose.msra.mxu0 0.0
    %155 = vmatprep.subr.mxu0 0.0
    %156 = vmatpush1.xpose.msra.mxu0 0.0
    %157 = vmatprep.subr.mxu0 0.0
    %158 = vmatpush1.xpose.msra.mxu0 0.0
    %159 = vmatprep.subr.mxu0 0.0
    %160 = vmatpush1.xpose.msra.mxu0 0.0
    %161 = vmatprep.subr.mxu0 0.0
    %162 = vmatpush1.xpose.msra.mxu0 0.0
    %163 = vmatprep.subr.mxu0 0.0
    %164 = vmatpush1.xpose.msra.mxu0 0.0
    %165 = vmatprep.subr.mxu0 0.0
    %166 = vmatpush1.xpose.msra.mxu0 0.0
    %167 = vmatprep.subr.mxu0 0.0
    %168 = vmatpush1.xpose.msra.mxu0 0.0
    %169 = vmatprep.subr.mxu0 0.0
    %170 = vmatpush1.xpose.msra.mxu0 0.0
    %171 = vmatprep.subr.mxu0 0.0
    %172 = vmatpush1.xpose.msra.mxu0 0.0
    %173 = vmatprep.subr.mxu0 0.0
    %174 = vmatpush1.xpose.msra.mxu0 0.0
    %175 = vmatprep.mubr.f32.mxu0 0.0
    %176 = vmatmul.mubr.f32.gmra.mrb[0].mxu0 %v106
    %v177 = vpop.f32.mrb[0].mxu0
    %v178 = vadd.f32 0.0, %v177
    %v179 = vpop.f32.mrb[0].mxu0
    %180 = vdwg.mxu0
    %v182 = vsel %vm104, %v89, 0
    %v185 = vsel %vm104, %v97, 0
    %187 = vmatprep.subr.mxu0 0.0
    %188 = vmatpush1.xpose.msra.mxu0 %v185
    %189 = vmatprep.subr.mxu0 0.0
    %190 = vmatpush1.xpose.msra.mxu0 0.0
    %191 = vmatprep.subr.mxu0 0.0
    %192 = vmatpush1.xpose.msra.mxu0 0.0
    %193 = vmatprep.subr.mxu0 0.0
    %194 = vmatpush1.xpose.msra.mxu0 0.0
    %195 = vmatprep.subr.mxu0 0.0
    %196 = vmatpush1.xpose.msra.mxu0 0.0
    %197 = vmatprep.subr.mxu0 0.0
    %198 = vmatpush1.xpose.msra.mxu0 0.0
    %199 = vmatprep.subr.mxu0 0.0
    %200 = vmatpush1.xpose.msra.mxu0 0.0
    %201 = vmatprep.subr.mxu0 0.0
    %202 = vmatpush1.xpose.msra.mxu0 0.0
    %203 = vmatprep.subr.mxu0 0.0
    %204 = vmatpush1.xpose.msra.mxu0 0.0
    %205 = vmatprep.subr.mxu0 0.0
    %206 = vmatpush1.xpose.msra.mxu0 0.0
    %207 = vmatprep.subr.mxu0 0.0
    %208 = vmatpush1.xpose.msra.mxu0 0.0
    %209 = vmatprep.subr.mxu0 0.0
    %210 = vmatpush1.xpose.msra.mxu0 0.0
    %211 = vmatprep.subr.mxu0 0.0
    %212 = vmatpush1.xpose.msra.mxu0 0.0
    %213 = vmatprep.subr.mxu0 0.0
    %214 = vmatpush1.xpose.msra.mxu0 0.0
    %215 = vmatprep.subr.mxu0 0.0
    %216 = vmatpush1.xpose.msra.mxu0 0.0
    %217 = vmatprep.subr.mxu0 0.0
    %218 = vmatpush1.xpose.msra.mxu0 0.0
    %219 = vmatprep.subr.mxu0 0.0
    %220 = vmatpush1.xpose.msra.mxu0 0.0
    %221 = vmatprep.subr.mxu0 0.0
    %222 = vmatpush1.xpose.msra.mxu0 0.0
    %223 = vmatprep.subr.mxu0 0.0
    %224 = vmatpush1.xpose.msra.mxu0 0.0
    %225 = vmatprep.subr.mxu0 0.0
    %226 = vmatpush1.xpose.msra.mxu0 0.0
    %227 = vmatprep.subr.mxu0 0.0
    %228 = vmatpush1.xpose.msra.mxu0 0.0
    %229 = vmatprep.subr.mxu0 0.0
    %230 = vmatpush1.xpose.msra.mxu0 0.0
    %231 = vmatprep.subr.mxu0 0.0
    %232 = vmatpush1.xpose.msra.mxu0 0.0
    %233 = vmatprep.subr.mxu0 0.0
    %234 = vmatpush1.xpose.msra.mxu0 0.0
    %235 = vmatprep.subr.mxu0 0.0
    %236 = vmatpush1.xpose.msra.mxu0 0.0
    %237 = vmatprep.subr.mxu0 0.0
    %238 = vmatpush1.xpose.msra.mxu0 0.0
    %239 = vmatprep.subr.mxu0 0.0
    %240 = vmatpush1.xpose.msra.mxu0 0.0
    %241 = vmatprep.subr.mxu0 0.0
    %242 = vmatpush1.xpose.msra.mxu0 0.0
    %243 = vmatprep.subr.mxu0 0.0
    %244 = vmatpush1.xpose.msra.mxu0 0.0
    %245 = vmatprep.subr.mxu0 0.0
    %246 = vmatpush1.xpose.msra.mxu0 0.0
    %247 = vmatprep.subr.mxu0 0.0
    %248 = vmatpush1.xpose.msra.mxu0 0.0
    %249 = vmatprep.subr.mxu0 0.0
    %250 = vmatpush1.xpose.msra.mxu0 0.0
    %251 = vmatprep.mubr.f32.mxu0 0.0
    %252 = vmatmul.mubr.f32.gmra.mrb[0].mxu0 %v182
    %v253 = vpop.f32.mrb[0].mxu0
    %v254 = vadd.f32 0.0, %v253
    %v255 = vpop.f32.mrb[0].mxu0
    %256 = vdwg.mxu0
    %v258 = vsel %vm104, %v90, 0
    %v261 = vsel %vm104, %v98, 0
    %263 = vmatprep.subr.mxu0 0.0
    %264 = vmatpush1.xpose.msra.mxu0 %v261
    %265 = vmatprep.subr.mxu0 0.0
    %266 = vmatpush1.xpose.msra.mxu0 0.0
    %267 = vmatprep.subr.mxu0 0.0
    %268 = vmatpush1.xpose.msra.mxu0 0.0
    %269 = vmatprep.subr.mxu0 0.0
    %270 = vmatpush1.xpose.msra.mxu0 0.0
    %271 = vmatprep.subr.mxu0 0.0
    %272 = vmatpush1.xpose.msra.mxu0 0.0
    %273 = vmatprep.subr.mxu0 0.0
    %274 = vmatpush1.xpose.msra.mxu0 0.0
    %275 = vmatprep.subr.mxu0 0.0
    %276 = vmatpush1.xpose.msra.mxu0 0.0
    %277 = vmatprep.subr.mxu0 0.0
    %278 = vmatpush1.xpose.msra.mxu0 0.0
    %279 = vmatprep.subr.mxu0 0.0
    %280 = vmatpush1.xpose.msra.mxu0 0.0
    %281 = vmatprep.subr.mxu0 0.0
    %282 = vmatpush1.xpose.msra.mxu0 0.0
    %283 = vmatprep.subr.mxu0 0.0
    %284 = vmatpush1.xpose.msra.mxu0 0.0
    %285 = vmatprep.subr.mxu0 0.0
    %286 = vmatpush1.xpose.msra.mxu0 0.0
    %287 = vmatprep.subr.mxu0 0.0
    %288 = vmatpush1.xpose.msra.mxu0 0.0
    %289 = vmatprep.subr.mxu0 0.0
    %290 = vmatpush1.xpose.msra.mxu0 0.0
    %291 = vmatprep.subr.mxu0 0.0
    %292 = vmatpush1.xpose.msra.mxu0 0.0
    %293 = vmatprep.subr.mxu0 0.0
    %294 = vmatpush1.xpose.msra.mxu0 0.0
    %295 = vmatprep.subr.mxu0 0.0
    %296 = vmatpush1.xpose.msra.mxu0 0.0
    %297 = vmatprep.subr.mxu0 0.0
    %298 = vmatpush1.xpose.msra.mxu0 0.0
    %299 = vmatprep.subr.mxu0 0.0
    %300 = vmatpush1.xpose.msra.mxu0 0.0
    %301 = vmatprep.subr.mxu0 0.0
    %302 = vmatpush1.xpose.msra.mxu0 0.0
    %303 = vmatprep.subr.mxu0 0.0
    %304 = vmatpush1.xpose.msra.mxu0 0.0
    %305 = vmatprep.subr.mxu0 0.0
    %306 = vmatpush1.xpose.msra.mxu0 0.0
    %307 = vmatprep.subr.mxu0 0.0
    %308 = vmatpush1.xpose.msra.mxu0 0.0
    %309 = vmatprep.subr.mxu0 0.0
    %310 = vmatpush1.xpose.msra.mxu0 0.0
    %311 = vmatprep.subr.mxu0 0.0
    %312 = vmatpush1.xpose.msra.mxu0 0.0
    %313 = vmatprep.subr.mxu0 0.0
    %314 = vmatpush1.xpose.msra.mxu0 0.0
    %315 = vmatprep.subr.mxu0 0.0
    %316 = vmatpush1.xpose.msra.mxu0 0.0
    %317 = vmatprep.subr.mxu0 0.0
    %318 = vmatpush1.xpose.msra.mxu0 0.0
    %319 = vmatprep.subr.mxu0 0.0
    %320 = vmatpush1.xpose.msra.mxu0 0.0
    %321 = vmatprep.subr.mxu0 0.0
    %322 = vmatpush1.xpose.msra.mxu0 0.0
    %323 = vmatprep.subr.mxu0 0.0
    %324 = vmatpush1.xpose.msra.mxu0 0.0
    %325 = vmatprep.subr.mxu0 0.0
    %326 = vmatpush1.xpose.msra.mxu0 0.0
    %327 = vmatprep.mubr.f32.mxu0 0.0
    %328 = vmatmul.mubr.f32.gmra.mrb[0].mxu0 %v258
    %v329 = vpop.f32.mrb[0].mxu0
    %v330 = vadd.f32 0.0, %v329
    %v331 = vpop.f32.mrb[0].mxu0
    %332 = vdwg.mxu0
    %v334 = vsel %vm104, %v91, 0
    %v337 = vsel %vm104, %v99, 0
    %339 = vmatprep.subr.mxu0 0.0
    %340 = vmatpush1.xpose.msra.mxu0 %v337
    %341 = vmatprep.subr.mxu0 0.0
    %342 = vmatpush1.xpose.msra.mxu0 0.0
    %343 = vmatprep.subr.mxu0 0.0
    %344 = vmatpush1.xpose.msra.mxu0 0.0
    %345 = vmatprep.subr.mxu0 0.0
    %346 = vmatpush1.xpose.msra.mxu0 0.0
    %347 = vmatprep.subr.mxu0 0.0
    %348 = vmatpush1.xpose.msra.mxu0 0.0
    %349 = vmatprep.subr.mxu0 0.0
    %350 = vmatpush1.xpose.msra.mxu0 0.0
    %351 = vmatprep.subr.mxu0 0.0
    %352 = vmatpush1.xpose.msra.mxu0 0.0
    %353 = vmatprep.subr.mxu0 0.0
    %354 = vmatpush1.xpose.msra.mxu0 0.0
    %355 = vmatprep.subr.mxu0 0.0
    %356 = vmatpush1.xpose.msra.mxu0 0.0
    %357 = vmatprep.subr.mxu0 0.0
    %358 = vmatpush1.xpose.msra.mxu0 0.0
    %359 = vmatprep.subr.mxu0 0.0
    %360 = vmatpush1.xpose.msra.mxu0 0.0
    %361 = vmatprep.subr.mxu0 0.0
    %362 = vmatpush1.xpose.msra.mxu0 0.0
    %363 = vmatprep.subr.mxu0 0.0
    %364 = vmatpush1.xpose.msra.mxu0 0.0
    %365 = vmatprep.subr.mxu0 0.0
    %366 = vmatpush1.xpose.msra.mxu0 0.0
    %367 = vmatprep.subr.mxu0 0.0
    %368 = vmatpush1.xpose.msra.mxu0 0.0
    %369 = vmatprep.subr.mxu0 0.0
    %370 = vmatpush1.xpose.msra.mxu0 0.0
    %371 = vmatprep.subr.mxu0 0.0
    %372 = vmatpush1.xpose.msra.mxu0 0.0
    %373 = vmatprep.subr.mxu0 0.0
    %374 = vmatpush1.xpose.msra.mxu0 0.0
    %375 = vmatprep.subr.mxu0 0.0
    %376 = vmatpush1.xpose.msra.mxu0 0.0
    %377 = vmatprep.subr.mxu0 0.0
    %378 = vmatpush1.xpose.msra.mxu0 0.0
    %379 = vmatprep.subr.mxu0 0.0
    %380 = vmatpush1.xpose.msra.mxu0 0.0
    %381 = vmatprep.subr.mxu0 0.0
    %382 = vmatpush1.xpose.msra.mxu0 0.0
    %383 = vmatprep.subr.mxu0 0.0
    %384 = vmatpush1.xpose.msra.mxu0 0.0
    %385 = vmatprep.subr.mxu0 0.0
    %386 = vmatpush1.xpose.msra.mxu0 0.0
    %387 = vmatprep.subr.mxu0 0.0
    %388 = vmatpush1.xpose.msra.mxu0 0.0
    %389 = vmatprep.subr.mxu0 0.0
    %390 = vmatpush1.xpose.msra.mxu0 0.0
    %391 = vmatprep.subr.mxu0 0.0
    %392 = vmatpush1.xpose.msra.mxu0 0.0
    %393 = vmatprep.subr.mxu0 0.0
    %394 = vmatpush1.xpose.msra.mxu0 0.0
    %395 = vmatprep.subr.mxu0 0.0
    %396 = vmatpush1.xpose.msra.mxu0 0.0
    %397 = vmatprep.subr.mxu0 0.0
    %398 = vmatpush1.xpose.msra.mxu0 0.0
    %399 = vmatprep.subr.mxu0 0.0
    %400 = vmatpush1.xpose.msra.mxu0 0.0
    %401 = vmatprep.subr.mxu0 0.0
    %402 = vmatpush1.xpose.msra.mxu0 0.0
    %403 = vmatprep.mubr.f32.mxu0 0.0
    %404 = vmatmul.mubr.f32.gmra.mrb[0].mxu0 %v334
    %v405 = vpop.f32.mrb[0].mxu0
    %v406 = vadd.f32 0.0, %v405
    %v407 = vpop.f32.mrb[0].mxu0
    %408 = vdwg.mxu0
    %v410 = vsel %vm104, %v92, 0
    %v413 = vsel %vm104, %v100, 0
    %415 = vmatprep.subr.mxu0 0.0
    %416 = vmatpush1.xpose.msra.mxu0 %v413
    %417 = vmatprep.subr.mxu0 0.0
    %418 = vmatpush1.xpose.msra.mxu0 0.0
    %419 = vmatprep.subr.mxu0 0.0
    %420 = vmatpush1.xpose.msra.mxu0 0.0
    %421 = vmatprep.subr.mxu0 0.0
    %422 = vmatpush1.xpose.msra.mxu0 0.0
    %423 = vmatprep.subr.mxu0 0.0
    %424 = vmatpush1.xpose.msra.mxu0 0.0
    %425 = vmatprep.subr.mxu0 0.0
    %426 = vmatpush1.xpose.msra.mxu0 0.0
    %427 = vmatprep.subr.mxu0 0.0
    %428 = vmatpush1.xpose.msra.mxu0 0.0
    %429 = vmatprep.subr.mxu0 0.0
    %430 = vmatpush1.xpose.msra.mxu0 0.0
    %431 = vmatprep.subr.mxu0 0.0
    %432 = vmatpush1.xpose.msra.mxu0 0.0
    %433 = vmatprep.subr.mxu0 0.0
    %434 = vmatpush1.xpose.msra.mxu0 0.0
    %435 = vmatprep.subr.mxu0 0.0
    %436 = vmatpush1.xpose.msra.mxu0 0.0
    %437 = vmatprep.subr.mxu0 0.0
    %438 = vmatpush1.xpose.msra.mxu0 0.0
    %439 = vmatprep.subr.mxu0 0.0
    %440 = vmatpush1.xpose.msra.mxu0 0.0
    %441 = vmatprep.subr.mxu0 0.0
    %442 = vmatpush1.xpose.msra.mxu0 0.0
    %443 = vmatprep.subr.mxu0 0.0
    %444 = vmatpush1.xpose.msra.mxu0 0.0
    %445 = vmatprep.subr.mxu0 0.0
    %446 = vmatpush1.xpose.msra.mxu0 0.0
    %447 = vmatprep.subr.mxu0 0.0
    %448 = vmatpush1.xpose.msra.mxu0 0.0
    %449 = vmatprep.subr.mxu0 0.0
    %450 = vmatpush1.xpose.msra.mxu0 0.0
    %451 = vmatprep.subr.mxu0 0.0
    %452 = vmatpush1.xpose.msra.mxu0 0.0
    %453 = vmatprep.subr.mxu0 0.0
    %454 = vmatpush1.xpose.msra.mxu0 0.0
    %455 = vmatprep.subr.mxu0 0.0
    %456 = vmatpush1.xpose.msra.mxu0 0.0
    %457 = vmatprep.subr.mxu0 0.0
    %458 = vmatpush1.xpose.msra.mxu0 0.0
    %459 = vmatprep.subr.mxu0 0.0
    %460 = vmatpush1.xpose.msra.mxu0 0.0
    %461 = vmatprep.subr.mxu0 0.0
    %462 = vmatpush1.xpose.msra.mxu0 0.0
    %463 = vmatprep.subr.mxu0 0.0
    %464 = vmatpush1.xpose.msra.mxu0 0.0
    %465 = vmatprep.subr.mxu0 0.0
    %466 = vmatpush1.xpose.msra.mxu0 0.0
    %467 = vmatprep.subr.mxu0 0.0
    %468 = vmatpush1.xpose.msra.mxu0 0.0
    %469 = vmatprep.subr.mxu0 0.0
    %470 = vmatpush1.xpose.msra.mxu0 0.0
    %471 = vmatprep.subr.mxu0 0.0
    %472 = vmatpush1.xpose.msra.mxu0 0.0
    %473 = vmatprep.subr.mxu0 0.0
    %474 = vmatpush1.xpose.msra.mxu0 0.0
    %475 = vmatprep.subr.mxu0 0.0
    %476 = vmatpush1.xpose.msra.mxu0 0.0
    %477 = vmatprep.subr.mxu0 0.0
    %478 = vmatpush1.xpose.msra.mxu0 0.0
    %479 = vmatprep.mubr.f32.mxu0 0.0
    %480 = vmatmul.mubr.f32.gmra.mrb[0].mxu0 %v410
    %v481 = vpop.f32.mrb[0].mxu0
    %v482 = vadd.f32 0.0, %v481
    %v483 = vpop.f32.mrb[0].mxu0
    %484 = vdwg.mxu0
    %v486 = vsel %vm104, %v93, 0
    %v489 = vsel %vm104, %v101, 0
    %491 = vmatprep.subr.mxu0 0.0
    %492 = vmatpush1.xpose.msra.mxu0 %v489
    %493 = vmatprep.subr.mxu0 0.0
    %494 = vmatpush1.xpose.msra.mxu0 0.0
    %495 = vmatprep.subr.mxu0 0.0
    %496 = vmatpush1.xpose.msra.mxu0 0.0
    %497 = vmatprep.subr.mxu0 0.0
    %498 = vmatpush1.xpose.msra.mxu0 0.0
    %499 = vmatprep.subr.mxu0 0.0
    %500 = vmatpush1.xpose.msra.mxu0 0.0
    %501 = vmatprep.subr.mxu0 0.0
    %502 = vmatpush1.xpose.msra.mxu0 0.0
    %503 = vmatprep.subr.mxu0 0.0
    %504 = vmatpush1.xpose.msra.mxu0 0.0
    %505 = vmatprep.subr.mxu0 0.0
    %506 = vmatpush1.xpose.msra.mxu0 0.0
    %507 = vmatprep.subr.mxu0 0.0
    %508 = vmatpush1.xpose.msra.mxu0 0.0
    %509 = vmatprep.subr.mxu0 0.0
    %510 = vmatpush1.xpose.msra.mxu0 0.0
    %511 = vmatprep.subr.mxu0 0.0
    %512 = vmatpush1.xpose.msra.mxu0 0.0
    %513 = vmatprep.subr.mxu0 0.0
    %514 = vmatpush1.xpose.msra.mxu0 0.0
    %515 = vmatprep.subr.mxu0 0.0
    %516 = vmatpush1.xpose.msra.mxu0 0.0
    %517 = vmatprep.subr.mxu0 0.0
    %518 = vmatpush1.xpose.msra.mxu0 0.0
    %519 = vmatprep.subr.mxu0 0.0
    %520 = vmatpush1.xpose.msra.mxu0 0.0
    %521 = vmatprep.subr.mxu0 0.0
    %522 = vmatpush1.xpose.msra.mxu0 0.0
    %523 = vmatprep.subr.mxu0 0.0
    %524 = vmatpush1.xpose.msra.mxu0 0.0
    %525 = vmatprep.subr.mxu0 0.0
    %526 = vmatpush1.xpose.msra.mxu0 0.0
    %527 = vmatprep.subr.mxu0 0.0
    %528 = vmatpush1.xpose.msra.mxu0 0.0
    %529 = vmatprep.subr.mxu0 0.0
    %530 = vmatpush1.xpose.msra.mxu0 0.0
    %531 = vmatprep.subr.mxu0 0.0
    %532 = vmatpush1.xpose.msra.mxu0 0.0
    %533 = vmatprep.subr.mxu0 0.0
    %534 = vmatpush1.xpose.msra.mxu0 0.0
    %535 = vmatprep.subr.mxu0 0.0
    %536 = vmatpush1.xpose.msra.mxu0 0.0
    %537 = vmatprep.subr.mxu0 0.0
    %538 = vmatpush1.xpose.msra.mxu0 0.0
    %539 = vmatprep.subr.mxu0 0.0
    %540 = vmatpush1.xpose.msra.mxu0 0.0
    %541 = vmatprep.subr.mxu0 0.0
    %542 = vmatpush1.xpose.msra.mxu0 0.0
    %543 = vmatprep.subr.mxu0 0.0
    %544 = vmatpush1.xpose.msra.mxu0 0.0
    %545 = vmatprep.subr.mxu0 0.0
    %546 = vmatpush1.xpose.msra.mxu0 0.0
    %547 = vmatprep.subr.mxu0 0.0
    %548 = vmatpush1.xpose.msra.mxu0 0.0
    %549 = vmatprep.subr.mxu0 0.0
    %550 = vmatpush1.xpose.msra.mxu0 0.0
    %551 = vmatprep.subr.mxu0 0.0
    %552 = vmatpush1.xpose.msra.mxu0 0.0
    %553 = vmatprep.subr.mxu0 0.0
    %554 = vmatpush1.xpose.msra.mxu0 0.0
    %555 = vmatprep.mubr.f32.mxu0 0.0
    %556 = vmatmul.mubr.f32.gmra.mrb[0].mxu0 %v486
    %v557 = vpop.f32.mrb[0].mxu0
    %v558 = vadd.f32 0.0, %v557
    %v559 = vpop.f32.mrb[0].mxu0
    %560 = vdwg.mxu0
    %v562 = vsel %vm104, %v94, 0
    %v565 = vsel %vm104, %v102, 0
    %567 = vmatprep.subr.mxu0 0.0
    %568 = vmatpush1.xpose.msra.mxu0 %v565
    %569 = vmatprep.subr.mxu0 0.0
    %570 = vmatpush1.xpose.msra.mxu0 0.0
    %571 = vmatprep.subr.mxu0 0.0
    %572 = vmatpush1.xpose.msra.mxu0 0.0
    %573 = vmatprep.subr.mxu0 0.0
    %574 = vmatpush1.xpose.msra.mxu0 0.0
    %575 = vmatprep.subr.mxu0 0.0
    %576 = vmatpush1.xpose.msra.mxu0 0.0
    %577 = vmatprep.subr.mxu0 0.0
    %578 = vmatpush1.xpose.msra.mxu0 0.0
    %579 = vmatprep.subr.mxu0 0.0
    %580 = vmatpush1.xpose.msra.mxu0 0.0
    %581 = vmatprep.subr.mxu0 0.0
    %582 = vmatpush1.xpose.msra.mxu0 0.0
    %583 = vmatprep.subr.mxu0 0.0
    %584 = vmatpush1.xpose.msra.mxu0 0.0
    %585 = vmatprep.subr.mxu0 0.0
    %586 = vmatpush1.xpose.msra.mxu0 0.0
    %587 = vmatprep.subr.mxu0 0.0
    %588 = vmatpush1.xpose.msra.mxu0 0.0
    %589 = vmatprep.subr.mxu0 0.0
    %590 = vmatpush1.xpose.msra.mxu0 0.0
    %591 = vmatprep.subr.mxu0 0.0
    %592 = vmatpush1.xpose.msra.mxu0 0.0
    %593 = vmatprep.subr.mxu0 0.0
    %594 = vmatpush1.xpose.msra.mxu0 0.0
    %595 = vmatprep.subr.mxu0 0.0
    %596 = vmatpush1.xpose.msra.mxu0 0.0
    %597 = vmatprep.subr.mxu0 0.0
    %598 = vmatpush1.xpose.msra.mxu0 0.0
    %599 = vmatprep.subr.mxu0 0.0
    %600 = vmatpush1.xpose.msra.mxu0 0.0
    %601 = vmatprep.subr.mxu0 0.0
    %602 = vmatpush1.xpose.msra.mxu0 0.0
    %603 = vmatprep.subr.mxu0 0.0
    %604 = vmatpush1.xpose.msra.mxu0 0.0
    %605 = vmatprep.subr.mxu0 0.0
    %606 = vmatpush1.xpose.msra.mxu0 0.0
    %607 = vmatprep.subr.mxu0 0.0
    %608 = vmatpush1.xpose.msra.mxu0 0.0
    %609 = vmatprep.subr.mxu0 0.0
    %610 = vmatpush1.xpose.msra.mxu0 0.0
    %611 = vmatprep.subr.mxu0 0.0
    %612 = vmatpush1.xpose.msra.mxu0 0.0
    %613 = vmatprep.subr.mxu0 0.0
    %614 = vmatpush1.xpose.msra.mxu0 0.0
    %615 = vmatprep.subr.mxu0 0.0
    %616 = vmatpush1.xpose.msra.mxu0 0.0
    %617 = vmatprep.subr.mxu0 0.0
    %618 = vmatpush1.xpose.msra.mxu0 0.0
    %619 = vmatprep.subr.mxu0 0.0
    %620 = vmatpush1.xpose.msra.mxu0 0.0
    %621 = vmatprep.subr.mxu0 0.0
    %622 = vmatpush1.xpose.msra.mxu0 0.0
    %623 = vmatprep.subr.mxu0 0.0
    %624 = vmatpush1.xpose.msra.mxu0 0.0
    %625 = vmatprep.subr.mxu0 0.0
    %626 = vmatpush1.xpose.msra.mxu0 0.0
    %627 = vmatprep.subr.mxu0 0.0
    %628 = vmatpush1.xpose.msra.mxu0 0.0
    %629 = vmatprep.subr.mxu0 0.0
    %630 = vmatpush1.xpose.msra.mxu0 0.0
    %631 = vmatprep.mubr.f32.mxu0 0.0
    %632 = vmatmul.mubr.f32.gmra.mrb[0].mxu0 %v562
    %v633 = vpop.f32.mrb[0].mxu0
    %v634 = vadd.f32 0.0, %v633
    %v635 = vpop.f32.mrb[0].mxu0
    %636 = vdwg.mxu0
    %v638 = vsel %vm104, %v95, 0
    %v641 = vsel %vm104, %v103, 0
    %643 = vmatprep.subr.mxu0 0.0
    %644 = vmatpush1.xpose.msra.mxu0 %v641
    %645 = vmatprep.subr.mxu0 0.0
    %646 = vmatpush1.xpose.msra.mxu0 0.0
    %647 = vmatprep.subr.mxu0 0.0
    %648 = vmatpush1.xpose.msra.mxu0 0.0
    %649 = vmatprep.subr.mxu0 0.0
    %650 = vmatpush1.xpose.msra.mxu0 0.0
    %651 = vmatprep.subr.mxu0 0.0
    %652 = vmatpush1.xpose.msra.mxu0 0.0
    %653 = vmatprep.subr.mxu0 0.0
    %654 = vmatpush1.xpose.msra.mxu0 0.0
    %655 = vmatprep.subr.mxu0 0.0
    %656 = vmatpush1.xpose.msra.mxu0 0.0
    %657 = vmatprep.subr.mxu0 0.0
    %658 = vmatpush1.xpose.msra.mxu0 0.0
    %659 = vmatprep.subr.mxu0 0.0
    %660 = vmatpush1.xpose.msra.mxu0 0.0
    %661 = vmatprep.subr.mxu0 0.0
    %662 = vmatpush1.xpose.msra.mxu0 0.0
    %663 = vmatprep.subr.mxu0 0.0
    %664 = vmatpush1.xpose.msra.mxu0 0.0
    %665 = vmatprep.subr.mxu0 0.0
    %666 = vmatpush1.xpose.msra.mxu0 0.0
    %667 = vmatprep.subr.mxu0 0.0
    %668 = vmatpush1.xpose.msra.mxu0 0.0
    %669 = vmatprep.subr.mxu0 0.0
    %670 = vmatpush1.xpose.msra.mxu0 0.0
    %671 = vmatprep.subr.mxu0 0.0
    %672 = vmatpush1.xpose.msra.mxu0 0.0
    %673 = vmatprep.subr.mxu0 0.0
    %674 = vmatpush1.xpose.msra.mxu0 0.0
    %675 = vmatprep.subr.mxu0 0.0
    %676 = vmatpush1.xpose.msra.mxu0 0.0
    %677 = vmatprep.subr.mxu0 0.0
    %678 = vmatpush1.xpose.msra.mxu0 0.0
    %679 = vmatprep.subr.mxu0 0.0
    %680 = vmatpush1.xpose.msra.mxu0 0.0
    %681 = vmatprep.subr.mxu0 0.0
    %682 = vmatpush1.xpose.msra.mxu0 0.0
    %683 = vmatprep.subr.mxu0 0.0
    %684 = vmatpush1.xpose.msra.mxu0 0.0
    %685 = vmatprep.subr.mxu0 0.0
    %686 = vmatpush1.xpose.msra.mxu0 0.0
    %687 = vmatprep.subr.mxu0 0.0
    %688 = vmatpush1.xpose.msra.mxu0 0.0
    %689 = vmatprep.subr.mxu0 0.0
    %690 = vmatpush1.xpose.msra.mxu0 0.0
    %691 = vmatprep.subr.mxu0 0.0
    %692 = vmatpush1.xpose.msra.mxu0 0.0
    %693 = vmatprep.subr.mxu0 0.0
    %694 = vmatpush1.xpose.msra.mxu0 0.0
    %695 = vmatprep.subr.mxu0 0.0
    %696 = vmatpush1.xpose.msra.mxu0 0.0
    %697 = vmatprep.subr.mxu0 0.0
    %698 = vmatpush1.xpose.msra.mxu0 0.0
    %699 = vmatprep.subr.mxu0 0.0
    %700 = vmatpush1.xpose.msra.mxu0 0.0
    %701 = vmatprep.subr.mxu0 0.0
    %702 = vmatpush1.xpose.msra.mxu0 0.0
    %703 = vmatprep.subr.mxu0 0.0
    %704 = vmatpush1.xpose.msra.mxu0 0.0
    %705 = vmatprep.subr.mxu0 0.0
    %706 = vmatpush1.xpose.msra.mxu0 0.0
    %707 = vmatprep.mubr.f32.mxu0 0.0
    %708 = vmatmul.mubr.f32.gmra.mrb[0].mxu0 %v638
    %v709 = vpop.f32.mrb[0].mxu0
    %v710 = vadd.f32 0.0, %v709
    %v711 = vpop.f32.mrb[0].mxu0
    %712 = vdwg.mxu0
    %vm713 = vcmask 64512
    %v714 = vsel %vm713, %v178, -inf
    %715 = vmax.xlane.f32.xlu0 %v714
    %v716 = vpop.xlane.xlu0 %715
    %v717 = vsel %vm713, %v254, -inf
    %718 = vmax.xlane.f32.xlu0 %v717
    %v719 = vpop.xlane.xlu0 %718
    %v720 = vsel %vm713, %v330, -inf
    %721 = vmax.xlane.f32.xlu0 %v720
    %v722 = vpop.xlane.xlu0 %721
    %v723 = vsel %vm713, %v406, -inf
    %724 = vmax.xlane.f32.xlu0 %v723
    %v725 = vpop.xlane.xlu0 %724
    %v726 = vsel %vm713, %v482, -inf
    %727 = vmax.xlane.f32.xlu0 %v726
    %v728 = vpop.xlane.xlu0 %727
    %v729 = vsel %vm713, %v558, -inf
    %730 = vmax.xlane.f32.xlu0 %v729
    %v731 = vpop.xlane.xlu0 %730
    %v732 = vsel %vm713, %v634, -inf
    %733 = vmax.xlane.f32.xlu0 %v732
    %v734 = vpop.xlane.xlu0 %733
    %v735 = vsel %vm713, %v710, -inf
    %736 = vmax.xlane.f32.xlu0 %v735
    %v737 = vpop.xlane.xlu0 %736
    %v738 = vsub.f32 %v178, %v716
    %v739 = vsub.f32 %v254, %v719
    %v740 = vsub.f32 %v330, %v722
    %v741 = vsub.f32 %v406, %v725
    %v742 = vsub.f32 %v482, %v728
    %v743 = vsub.f32 %v558, %v731
    %v744 = vsub.f32 %v634, %v734
    %v745 = vsub.f32 %v710, %v737
    %v746 = vmul.f32 %v738, 1.442695
    %v747 = vpow.pop %v746
    %v748 = vmul.f32 %v739, 1.442695
    %v749 = vpow.pop %v748
    %v750 = vmul.f32 %v740, 1.442695
    %v751 = vpow.pop %v750
    %v752 = vmul.f32 %v741, 1.442695
    %v753 = vpow.pop %v752
    %v754 = vmul.f32 %v742, 1.442695
    %v755 = vpow.pop %v754
    %v756 = vmul.f32 %v743, 1.442695
    %v757 = vpow.pop %v756
    %v758 = vmul.f32 %v744, 1.442695
    %v759 = vpow.pop %v758
    %v760 = vmul.f32 %v745, 1.442695
    %v761 = vpow.pop %v760
    %v762 = vsel %vm713, %v747, 0.0
    %763 = vadd.xlane.f32.xlu0 %v762
    %v764 = vpop.xlane.xlu0 %763
    %v765 = vsel %vm713, %v749, 0.0
    %766 = vadd.xlane.f32.xlu0 %v765
    %v767 = vpop.xlane.xlu0 %766
    %v768 = vsel %vm713, %v751, 0.0
    %769 = vadd.xlane.f32.xlu0 %v768
    %v770 = vpop.xlane.xlu0 %769
    %v771 = vsel %vm713, %v753, 0.0
    %772 = vadd.xlane.f32.xlu0 %v771
    %v773 = vpop.xlane.xlu0 %772
    %v774 = vsel %vm713, %v755, 0.0
    %775 = vadd.xlane.f32.xlu0 %v774
    %v776 = vpop.xlane.xlu0 %775
    %v777 = vsel %vm713, %v757, 0.0
    %778 = vadd.xlane.f32.xlu0 %v777
    %v779 = vpop.xlane.xlu0 %778
    %v780 = vsel %vm713, %v759, 0.0
    %781 = vadd.xlane.f32.xlu0 %v780
    %v782 = vpop.xlane.xlu0 %781
    %v783 = vsel %vm713, %v761, 0.0
    %784 = vadd.xlane.f32.xlu0 %v783
    %v785 = vpop.xlane.xlu0 %784
    %v786 = vrcp.pop %v764
    %v787 = vrcp.pop %v767
    %v788 = vrcp.pop %v770
    %v789 = vrcp.pop %v773
    %v790 = vrcp.pop %v776
    %v791 = vrcp.pop %v779
    %v792 = vrcp.pop %v782
    %v793 = vrcp.pop %v785
    %v794 = vmul.f32 %v747, %v786
    %v795 = vmul.f32 %v749, %v787
    %v796 = vmul.f32 %v751, %v788
    %v797 = vmul.f32 %v753, %v789
    %v798 = vmul.f32 %v755, %v790
    %v799 = vmul.f32 %v757, %v791
    %v800 = vmul.f32 %v759, %v792
    %v801 = vmul.f32 %v761, %v793
    %v802 = vld [vmem:[#allocation2] sm:$0xff]
    %v804 = vsel %vm713, %v794, 0
    %806 = vmatprep.subr.mxu0 0.0
    %807 = vmatpush1.msra.mxu0 %v802
    %808 = vmatprep.subr.mxu0 0.0
    %809 = vmatpush1.msra.mxu0 0.0
    %810 = vmatprep.subr.mxu0 0.0
    %811 = vmatpush1.msra.mxu0 0.0
    %812 = vmatprep.subr.mxu0 0.0
    %813 = vmatpush1.msra.mxu0 0.0
    %814 = vmatprep.subr.mxu0 0.0
    %815 = vmatpush1.msra.mxu0 0.0
    %816 = vmatprep.subr.mxu0 0.0
    %817 = vmatpush1.msra.mxu0 0.0
    %818 = vmatprep.subr.mxu0 0.0
    %819 = vmatpush1.msra.mxu0 0.0
    %820 = vmatprep.subr.mxu0 0.0
    %821 = vmatpush1.msra.mxu0 0.0
    %822 = vmatprep.subr.mxu0 0.0
    %823 = vmatpush1.msra.mxu0 0.0
    %824 = vmatprep.subr.mxu0 0.0
    %825 = vmatpush1.msra.mxu0 0.0
    %826 = vmatprep.subr.mxu0 0.0
    %827 = vmatpush1.msra.mxu0 0.0
    %828 = vmatprep.subr.mxu0 0.0
    %829 = vmatpush1.msra.mxu0 0.0
    %830 = vmatprep.subr.mxu0 0.0
    %831 = vmatpush1.msra.mxu0 0.0
    %832 = vmatprep.subr.mxu0 0.0
    %833 = vmatpush1.msra.mxu0 0.0
    %834 = vmatprep.subr.mxu0 0.0
    %835 = vmatpush1.msra.mxu0 0.0
    %836 = vmatprep.subr.mxu0 0.0
    %837 = vmatpush1.msra.mxu0 0.0
    %838 = vmatprep.subr.mxu0 0.0
    %839 = vmatpush1.msra.mxu0 0.0
    %840 = vmatprep.subr.mxu0 0.0
    %841 = vmatpush1.msra.mxu0 0.0
    %842 = vmatprep.subr.mxu0 0.0
    %843 = vmatpush1.msra.mxu0 0.0
    %844 = vmatprep.subr.mxu0 0.0
    %845 = vmatpush1.msra.mxu0 0.0
    %846 = vmatprep.subr.mxu0 0.0
    %847 = vmatpush1.msra.mxu0 0.0
    %848 = vmatprep.subr.mxu0 0.0
    %849 = vmatpush1.msra.mxu0 0.0
    %850 = vmatprep.subr.mxu0 0.0
    %851 = vmatpush1.msra.mxu0 0.0
    %852 = vmatprep.subr.mxu0 0.0
    %853 = vmatpush1.msra.mxu0 0.0
    %854 = vmatprep.subr.mxu0 0.0
    %855 = vmatpush1.msra.mxu0 0.0
    %856 = vmatprep.subr.mxu0 0.0
    %857 = vmatpush1.msra.mxu0 0.0
    %858 = vmatprep.subr.mxu0 0.0
    %859 = vmatpush1.msra.mxu0 0.0
    %860 = vmatprep.subr.mxu0 0.0
    %861 = vmatpush1.msra.mxu0 0.0
    %862 = vmatprep.subr.mxu0 0.0
    %863 = vmatpush1.msra.mxu0 0.0
    %864 = vmatprep.subr.mxu0 0.0
    %865 = vmatpush1.msra.mxu0 0.0
    %866 = vmatprep.subr.mxu0 0.0
    %867 = vmatpush1.msra.mxu0 0.0
    %868 = vmatprep.subr.mxu0 0.0
    %869 = vmatpush1.msra.mxu0 0.0
    %870 = vmatprep.mubr.f32.mxu0 0.0
    %871 = vmatmul.mubr.f32.gmra.mrb[0].mxu0 %v804
    %v872 = vpop.f32.mrb[0].mxu0
    %v873 = vadd.f32 0.0, %v872
    %v874 = vpop.f32.mrb[0].mxu0
    %875 = vdwg.mxu0
    %v877 = vsel %vm713, %v795, 0
    %879 = vmatprep.subr.mxu0 0.0
    %880 = vmatpush1.msra.mxu0 %v802
    %881 = vmatprep.subr.mxu0 0.0
    %882 = vmatpush1.msra.mxu0 0.0
    %883 = vmatprep.subr.mxu0 0.0
    %884 = vmatpush1.msra.mxu0 0.0
    %885 = vmatprep.subr.mxu0 0.0
    %886 = vmatpush1.msra.mxu0 0.0
    %887 = vmatprep.subr.mxu0 0.0
    %888 = vmatpush1.msra.mxu0 0.0
    %889 = vmatprep.subr.mxu0 0.0
    %890 = vmatpush1.msra.mxu0 0.0
    %891 = vmatprep.subr.mxu0 0.0
    %892 = vmatpush1.msra.mxu0 0.0
    %893 = vmatprep.subr.mxu0 0.0
    %894 = vmatpush1.msra.mxu0 0.0
    %895 = vmatprep.subr.mxu0 0.0
    %896 = vmatpush1.msra.mxu0 0.0
    %897 = vmatprep.subr.mxu0 0.0
    %898 = vmatpush1.msra.mxu0 0.0
    %899 = vmatprep.subr.mxu0 0.0
    %900 = vmatpush1.msra.mxu0 0.0
    %901 = vmatprep.subr.mxu0 0.0
    %902 = vmatpush1.msra.mxu0 0.0
    %903 = vmatprep.subr.mxu0 0.0
    %904 = vmatpush1.msra.mxu0 0.0
    %905 = vmatprep.subr.mxu0 0.0
    %906 = vmatpush1.msra.mxu0 0.0
    %907 = vmatprep.subr.mxu0 0.0
    %908 = vmatpush1.msra.mxu0 0.0
    %909 = vmatprep.subr.mxu0 0.0
    %910 = vmatpush1.msra.mxu0 0.0
    %911 = vmatprep.subr.mxu0 0.0
    %912 = vmatpush1.msra.mxu0 0.0
    %913 = vmatprep.subr.mxu0 0.0
    %914 = vmatpush1.msra.mxu0 0.0
    %915 = vmatprep.subr.mxu0 0.0
    %916 = vmatpush1.msra.mxu0 0.0
    %917 = vmatprep.subr.mxu0 0.0
    %918 = vmatpush1.msra.mxu0 0.0
    %919 = vmatprep.subr.mxu0 0.0
    %920 = vmatpush1.msra.mxu0 0.0
    %921 = vmatprep.subr.mxu0 0.0
    %922 = vmatpush1.msra.mxu0 0.0
    %923 = vmatprep.subr.mxu0 0.0
    %924 = vmatpush1.msra.mxu0 0.0
    %925 = vmatprep.subr.mxu0 0.0
    %926 = vmatpush1.msra.mxu0 0.0
    %927 = vmatprep.subr.mxu0 0.0
    %928 = vmatpush1.msra.mxu0 0.0
    %929 = vmatprep.subr.mxu0 0.0
    %930 = vmatpush1.msra.mxu0 0.0
    %931 = vmatprep.subr.mxu0 0.0
    %932 = vmatpush1.msra.mxu0 0.0
    %933 = vmatprep.subr.mxu0 0.0
    %934 = vmatpush1.msra.mxu0 0.0
    %935 = vmatprep.subr.mxu0 0.0
    %936 = vmatpush1.msra.mxu0 0.0
    %937 = vmatprep.subr.mxu0 0.0
    %938 = vmatpush1.msra.mxu0 0.0
    %939 = vmatprep.subr.mxu0 0.0
    %940 = vmatpush1.msra.mxu0 0.0
    %941 = vmatprep.subr.mxu0 0.0
    %942 = vmatpush1.msra.mxu0 0.0
    %943 = vmatprep.mubr.f32.mxu0 0.0
    %944 = vmatmul.mubr.f32.gmra.mrb[0].mxu0 %v877
    %v945 = vpop.f32.mrb[0].mxu0
    %v946 = vadd.f32 0.0, %v945
    %v947 = vpop.f32.mrb[0].mxu0
    %948 = vdwg.mxu0
    %v950 = vsel %vm713, %v796, 0
    %952 = vmatprep.subr.mxu0 0.0
    %953 = vmatpush1.msra.mxu0 %v802
    %954 = vmatprep.subr.mxu0 0.0
    %955 = vmatpush1.msra.mxu0 0.0
    %956 = vmatprep.subr.mxu0 0.0
    %957 = vmatpush1.msra.mxu0 0.0
    %958 = vmatprep.subr.mxu0 0.0
    %959 = vmatpush1.msra.mxu0 0.0
    %960 = vmatprep.subr.mxu0 0.0
    %961 = vmatpush1.msra.mxu0 0.0
    %962 = vmatprep.subr.mxu0 0.0
    %963 = vmatpush1.msra.mxu0 0.0
    %964 = vmatprep.subr.mxu0 0.0
    %965 = vmatpush1.msra.mxu0 0.0
    %966 = vmatprep.subr.mxu0 0.0
    %967 = vmatpush1.msra.mxu0 0.0
    %968 = vmatprep.subr.mxu0 0.0
    %969 = vmatpush1.msra.mxu0 0.0
    %970 = vmatprep.subr.mxu0 0.0
    %971 = vmatpush1.msra.mxu0 0.0
    %972 = vmatprep.subr.mxu0 0.0
    %973 = vmatpush1.msra.mxu0 0.0
    %974 = vmatprep.subr.mxu0 0.0
    %975 = vmatpush1.msra.mxu0 0.0
    %976 = vmatprep.subr.mxu0 0.0
    %977 = vmatpush1.msra.mxu0 0.0
    %978 = vmatprep.subr.mxu0 0.0
    %979 = vmatpush1.msra.mxu0 0.0
    %980 = vmatprep.subr.mxu0 0.0
    %981 = vmatpush1.msra.mxu0 0.0
    %982 = vmatprep.subr.mxu0 0.0
    %983 = vmatpush1.msra.mxu0 0.0
    %984 = vmatprep.subr.mxu0 0.0
    %985 = vmatpush1.msra.mxu0 0.0
    %986 = vmatprep.subr.mxu0 0.0
    %987 = vmatpush1.msra.mxu0 0.0
    %988 = vmatprep.subr.mxu0 0.0
    %989 = vmatpush1.msra.mxu0 0.0
    %990 = vmatprep.subr.mxu0 0.0
    %991 = vmatpush1.msra.mxu0 0.0
    %992 = vmatprep.subr.mxu0 0.0
    %993 = vmatpush1.msra.mxu0 0.0
    %994 = vmatprep.subr.mxu0 0.0
    %995 = vmatpush1.msra.mxu0 0.0
    %996 = vmatprep.subr.mxu0 0.0
    %997 = vmatpush1.msra.mxu0 0.0
    %998 = vmatprep.subr.mxu0 0.0
    %999 = vmatpush1.msra.mxu0 0.0
    %1000 = vmatprep.subr.mxu0 0.0
    %1001 = vmatpush1.msra.mxu0 0.0
    %1002 = vmatprep.subr.mxu0 0.0
    %1003 = vmatpush1.msra.mxu0 0.0
    %1004 = vmatprep.subr.mxu0 0.0
    %1005 = vmatpush1.msra.mxu0 0.0
    %1006 = vmatprep.subr.mxu0 0.0
    %1007 = vmatpush1.msra.mxu0 0.0
    %1008 = vmatprep.subr.mxu0 0.0
    %1009 = vmatpush1.msra.mxu0 0.0
    %1010 = vmatprep.subr.mxu0 0.0
    %1011 = vmatpush1.msra.mxu0 0.0
    %1012 = vmatprep.subr.mxu0 0.0
    %1013 = vmatpush1.msra.mxu0 0.0
    %1014 = vmatprep.subr.mxu0 0.0
    %1015 = vmatpush1.msra.mxu0 0.0
    %1016 = vmatprep.mubr.f32.mxu0 0.0
    %1017 = vmatmul.mubr.f32.gmra.mrb[0].mxu0 %v950
    %v1018 = vpop.f32.mrb[0].mxu0
    %v1019 = vadd.f32 0.0, %v1018
    %v1020 = vpop.f32.mrb[0].mxu0
    %1021 = vdwg.mxu0
    %v1023 = vsel %vm713, %v797, 0
    %1025 = vmatprep.subr.mxu0 0.0
    %1026 = vmatpush1.msra.mxu0 %v802
    %1027 = vmatprep.subr.mxu0 0.0
    %1028 = vmatpush1.msra.mxu0 0.0
    %1029 = vmatprep.subr.mxu0 0.0
    %1030 = vmatpush1.msra.mxu0 0.0
    %1031 = vmatprep.subr.mxu0 0.0
    %1032 = vmatpush1.msra.mxu0 0.0
    %1033 = vmatprep.subr.mxu0 0.0
    %1034 = vmatpush1.msra.mxu0 0.0
    %1035 = vmatprep.subr.mxu0 0.0
    %1036 = vmatpush1.msra.mxu0 0.0
    %1037 = vmatprep.subr.mxu0 0.0
    %1038 = vmatpush1.msra.mxu0 0.0
    %1039 = vmatprep.subr.mxu0 0.0
    %1040 = vmatpush1.msra.mxu0 0.0
    %1041 = vmatprep.subr.mxu0 0.0
    %1042 = vmatpush1.msra.mxu0 0.0
    %1043 = vmatprep.subr.mxu0 0.0
    %1044 = vmatpush1.msra.mxu0 0.0
    %1045 = vmatprep.subr.mxu0 0.0
    %1046 = vmatpush1.msra.mxu0 0.0
    %1047 = vmatprep.subr.mxu0 0.0
    %1048 = vmatpush1.msra.mxu0 0.0
    %1049 = vmatprep.subr.mxu0 0.0
    %1050 = vmatpush1.msra.mxu0 0.0
    %1051 = vmatprep.subr.mxu0 0.0
    %1052 = vmatpush1.msra.mxu0 0.0
    %1053 = vmatprep.subr.mxu0 0.0
    %1054 = vmatpush1.msra.mxu0 0.0
    %1055 = vmatprep.subr.mxu0 0.0
    %1056 = vmatpush1.msra.mxu0 0.0
    %1057 = vmatprep.subr.mxu0 0.0
    %1058 = vmatpush1.msra.mxu0 0.0
    %1059 = vmatprep.subr.mxu0 0.0
    %1060 = vmatpush1.msra.mxu0 0.0
    %1061 = vmatprep.subr.mxu0 0.0
    %1062 = vmatpush1.msra.mxu0 0.0
    %1063 = vmatprep.subr.mxu0 0.0
    %1064 = vmatpush1.msra.mxu0 0.0
    %1065 = vmatprep.subr.mxu0 0.0
    %1066 = vmatpush1.msra.mxu0 0.0
    %1067 = vmatprep.subr.mxu0 0.0
    %1068 = vmatpush1.msra.mxu0 0.0
    %1069 = vmatprep.subr.mxu0 0.0
    %1070 = vmatpush1.msra.mxu0 0.0
    %1071 = vmatprep.subr.mxu0 0.0
    %1072 = vmatpush1.msra.mxu0 0.0
    %1073 = vmatprep.subr.mxu0 0.0
    %1074 = vmatpush1.msra.mxu0 0.0
    %1075 = vmatprep.subr.mxu0 0.0
    %1076 = vmatpush1.msra.mxu0 0.0
    %1077 = vmatprep.subr.mxu0 0.0
    %1078 = vmatpush1.msra.mxu0 0.0
    %1079 = vmatprep.subr.mxu0 0.0
    %1080 = vmatpush1.msra.mxu0 0.0
    %1081 = vmatprep.subr.mxu0 0.0
    %1082 = vmatpush1.msra.mxu0 0.0
    %1083 = vmatprep.subr.mxu0 0.0
    %1084 = vmatpush1.msra.mxu0 0.0
    %1085 = vmatprep.subr.mxu0 0.0
    %1086 = vmatpush1.msra.mxu0 0.0
    %1087 = vmatprep.subr.mxu0 0.0
    %1088 = vmatpush1.msra.mxu0 0.0
    %1089 = vmatprep.mubr.f32.mxu0 0.0
    %1090 = vmatmul.mubr.f32.gmra.mrb[0].mxu0 %v1023
    %v1091 = vpop.f32.mrb[0].mxu0
    %v1092 = vadd.f32 0.0, %v1091
    %v1093 = vpop.f32.mrb[0].mxu0
    %1094 = vdwg.mxu0
    %v1096 = vsel %vm713, %v798, 0
    %1098 = vmatprep.subr.mxu0 0.0
    %1099 = vmatpush1.msra.mxu0 %v802
    %1100 = vmatprep.subr.mxu0 0.0
    %1101 = vmatpush1.msra.mxu0 0.0
    %1102 = vmatprep.subr.mxu0 0.0
    %1103 = vmatpush1.msra.mxu0 0.0
    %1104 = vmatprep.subr.mxu0 0.0
    %1105 = vmatpush1.msra.mxu0 0.0
    %1106 = vmatprep.subr.mxu0 0.0
    %1107 = vmatpush1.msra.mxu0 0.0
    %1108 = vmatprep.subr.mxu0 0.0
    %1109 = vmatpush1.msra.mxu0 0.0
    %1110 = vmatprep.subr.mxu0 0.0
    %1111 = vmatpush1.msra.mxu0 0.0
    %1112 = vmatprep.subr.mxu0 0.0
    %1113 = vmatpush1.msra.mxu0 0.0
    %1114 = vmatprep.subr.mxu0 0.0
    %1115 = vmatpush1.msra.mxu0 0.0
    %1116 = vmatprep.subr.mxu0 0.0
    %1117 = vmatpush1.msra.mxu0 0.0
    %1118 = vmatprep.subr.mxu0 0.0
    %1119 = vmatpush1.msra.mxu0 0.0
    %1120 = vmatprep.subr.mxu0 0.0
    %1121 = vmatpush1.msra.mxu0 0.0
    %1122 = vmatprep.subr.mxu0 0.0
    %1123 = vmatpush1.msra.mxu0 0.0
    %1124 = vmatprep.subr.mxu0 0.0
    %1125 = vmatpush1.msra.mxu0 0.0
    %1126 = vmatprep.subr.mxu0 0.0
    %1127 = vmatpush1.msra.mxu0 0.0
    %1128 = vmatprep.subr.mxu0 0.0
    %1129 = vmatpush1.msra.mxu0 0.0
    %1130 = vmatprep.subr.mxu0 0.0
    %1131 = vmatpush1.msra.mxu0 0.0
    %1132 = vmatprep.subr.mxu0 0.0
    %1133 = vmatpush1.msra.mxu0 0.0
    %1134 = vmatprep.subr.mxu0 0.0
    %1135 = vmatpush1.msra.mxu0 0.0
    %1136 = vmatprep.subr.mxu0 0.0
    %1137 = vmatpush1.msra.mxu0 0.0
    %1138 = vmatprep.subr.mxu0 0.0
    %1139 = vmatpush1.msra.mxu0 0.0
    %1140 = vmatprep.subr.mxu0 0.0
    %1141 = vmatpush1.msra.mxu0 0.0
    %1142 = vmatprep.subr.mxu0 0.0
    %1143 = vmatpush1.msra.mxu0 0.0
    %1144 = vmatprep.subr.mxu0 0.0
    %1145 = vmatpush1.msra.mxu0 0.0
    %1146 = vmatprep.subr.mxu0 0.0
    %1147 = vmatpush1.msra.mxu0 0.0
    %1148 = vmatprep.subr.mxu0 0.0
    %1149 = vmatpush1.msra.mxu0 0.0
    %1150 = vmatprep.subr.mxu0 0.0
    %1151 = vmatpush1.msra.mxu0 0.0
    %1152 = vmatprep.subr.mxu0 0.0
    %1153 = vmatpush1.msra.mxu0 0.0
    %1154 = vmatprep.subr.mxu0 0.0
    %1155 = vmatpush1.msra.mxu0 0.0
    %1156 = vmatprep.subr.mxu0 0.0
    %1157 = vmatpush1.msra.mxu0 0.0
    %1158 = vmatprep.subr.mxu0 0.0
    %1159 = vmatpush1.msra.mxu0 0.0
    %1160 = vmatprep.subr.mxu0 0.0
    %1161 = vmatpush1.msra.mxu0 0.0
    %1162 = vmatprep.mubr.f32.mxu0 0.0
    %1163 = vmatmul.mubr.f32.gmra.mrb[0].mxu0 %v1096
    %v1164 = vpop.f32.mrb[0].mxu0
    %v1165 = vadd.f32 0.0, %v1164
    %v1166 = vpop.f32.mrb[0].mxu0
    %1167 = vdwg.mxu0
    %v1169 = vsel %vm713, %v799, 0
    %1171 = vmatprep.subr.mxu0 0.0
    %1172 = vmatpush1.msra.mxu0 %v802
    %1173 = vmatprep.subr.mxu0 0.0
    %1174 = vmatpush1.msra.mxu0 0.0
    %1175 = vmatprep.subr.mxu0 0.0
    %1176 = vmatpush1.msra.mxu0 0.0
    %1177 = vmatprep.subr.mxu0 0.0
    %1178 = vmatpush1.msra.mxu0 0.0
    %1179 = vmatprep.subr.mxu0 0.0
    %1180 = vmatpush1.msra.mxu0 0.0
    %1181 = vmatprep.subr.mxu0 0.0
    %1182 = vmatpush1.msra.mxu0 0.0
    %1183 = vmatprep.subr.mxu0 0.0
    %1184 = vmatpush1.msra.mxu0 0.0
    %1185 = vmatprep.subr.mxu0 0.0
    %1186 = vmatpush1.msra.mxu0 0.0
    %1187 = vmatprep.subr.mxu0 0.0
    %1188 = vmatpush1.msra.mxu0 0.0
    %1189 = vmatprep.subr.mxu0 0.0
    %1190 = vmatpush1.msra.mxu0 0.0
    %1191 = vmatprep.subr.mxu0 0.0
    %1192 = vmatpush1.msra.mxu0 0.0
    %1193 = vmatprep.subr.mxu0 0.0
    %1194 = vmatpush1.msra.mxu0 0.0
    %1195 = vmatprep.subr.mxu0 0.0
    %1196 = vmatpush1.msra.mxu0 0.0
    %1197 = vmatprep.subr.mxu0 0.0
    %1198 = vmatpush1.msra.mxu0 0.0
    %1199 = vmatprep.subr.mxu0 0.0
    %1200 = vmatpush1.msra.mxu0 0.0
    %1201 = vmatprep.subr.mxu0 0.0
    %1202 = vmatpush1.msra.mxu0 0.0
    %1203 = vmatprep.subr.mxu0 0.0
    %1204 = vmatpush1.msra.mxu0 0.0
    %1205 = vmatprep.subr.mxu0 0.0
    %1206 = vmatpush1.msra.mxu0 0.0
    %1207 = vmatprep.subr.mxu0 0.0
    %1208 = vmatpush1.msra.mxu0 0.0
    %1209 = vmatprep.subr.mxu0 0.0
    %1210 = vmatpush1.msra.mxu0 0.0
    %1211 = vmatprep.subr.mxu0 0.0
    %1212 = vmatpush1.msra.mxu0 0.0
    %1213 = vmatprep.subr.mxu0 0.0
    %1214 = vmatpush1.msra.mxu0 0.0
    %1215 = vmatprep.subr.mxu0 0.0
    %1216 = vmatpush1.msra.mxu0 0.0
    %1217 = vmatprep.subr.mxu0 0.0
    %1218 = vmatpush1.msra.mxu0 0.0
    %1219 = vmatprep.subr.mxu0 0.0
    %1220 = vmatpush1.msra.mxu0 0.0
    %1221 = vmatprep.subr.mxu0 0.0
    %1222 = vmatpush1.msra.mxu0 0.0
    %1223 = vmatprep.subr.mxu0 0.0
    %1224 = vmatpush1.msra.mxu0 0.0
    %1225 = vmatprep.subr.mxu0 0.0
    %1226 = vmatpush1.msra.mxu0 0.0
    %1227 = vmatprep.subr.mxu0 0.0
    %1228 = vmatpush1.msra.mxu0 0.0
    %1229 = vmatprep.subr.mxu0 0.0
    %1230 = vmatpush1.msra.mxu0 0.0
    %1231 = vmatprep.subr.mxu0 0.0
    %1232 = vmatpush1.msra.mxu0 0.0
    %1233 = vmatprep.subr.mxu0 0.0
    %1234 = vmatpush1.msra.mxu0 0.0
    %1235 = vmatprep.mubr.f32.mxu0 0.0
    %1236 = vmatmul.mubr.f32.gmra.mrb[0].mxu0 %v1169
    %v1237 = vpop.f32.mrb[0].mxu0
    %v1238 = vadd.f32 0.0, %v1237
    %v1239 = vpop.f32.mrb[0].mxu0
    %1240 = vdwg.mxu0
    %v1242 = vsel %vm713, %v800, 0
    %1244 = vmatprep.subr.mxu0 0.0
    %1245 = vmatpush1.msra.mxu0 %v802
    %1246 = vmatprep.subr.mxu0 0.0
    %1247 = vmatpush1.msra.mxu0 0.0
    %1248 = vmatprep.subr.mxu0 0.0
    %1249 = vmatpush1.msra.mxu0 0.0
    %1250 = vmatprep.subr.mxu0 0.0
    %1251 = vmatpush1.msra.mxu0 0.0
    %1252 = vmatprep.subr.mxu0 0.0
    %1253 = vmatpush1.msra.mxu0 0.0
    %1254 = vmatprep.subr.mxu0 0.0
    %1255 = vmatpush1.msra.mxu0 0.0
    %1256 = vmatprep.subr.mxu0 0.0
    %1257 = vmatpush1.msra.mxu0 0.0
    %1258 = vmatprep.subr.mxu0 0.0
    %1259 = vmatpush1.msra.mxu0 0.0
    %1260 = vmatprep.subr.mxu0 0.0
    %1261 = vmatpush1.msra.mxu0 0.0
    %1262 = vmatprep.subr.mxu0 0.0
    %1263 = vmatpush1.msra.mxu0 0.0
    %1264 = vmatprep.subr.mxu0 0.0
    %1265 = vmatpush1.msra.mxu0 0.0
    %1266 = vmatprep.subr.mxu0 0.0
    %1267 = vmatpush1.msra.mxu0 0.0
    %1268 = vmatprep.subr.mxu0 0.0
    %1269 = vmatpush1.msra.mxu0 0.0
    %1270 = vmatprep.subr.mxu0 0.0
    %1271 = vmatpush1.msra.mxu0 0.0
    %1272 = vmatprep.subr.mxu0 0.0
    %1273 = vmatpush1.msra.mxu0 0.0
    %1274 = vmatprep.subr.mxu0 0.0
    %1275 = vmatpush1.msra.mxu0 0.0
    %1276 = vmatprep.subr.mxu0 0.0
    %1277 = vmatpush1.msra.mxu0 0.0
    %1278 = vmatprep.subr.mxu0 0.0
    %1279 = vmatpush1.msra.mxu0 0.0
    %1280 = vmatprep.subr.mxu0 0.0
    %1281 = vmatpush1.msra.mxu0 0.0
    %1282 = vmatprep.subr.mxu0 0.0
    %1283 = vmatpush1.msra.mxu0 0.0
    %1284 = vmatprep.subr.mxu0 0.0
    %1285 = vmatpush1.msra.mxu0 0.0
    %1286 = vmatprep.subr.mxu0 0.0
    %1287 = vmatpush1.msra.mxu0 0.0
    %1288 = vmatprep.subr.mxu0 0.0
    %1289 = vmatpush1.msra.mxu0 0.0
    %1290 = vmatprep.subr.mxu0 0.0
    %1291 = vmatpush1.msra.mxu0 0.0
    %1292 = vmatprep.subr.mxu0 0.0
    %1293 = vmatpush1.msra.mxu0 0.0
    %1294 = vmatprep.subr.mxu0 0.0
    %1295 = vmatpush1.msra.mxu0 0.0
    %1296 = vmatprep.subr.mxu0 0.0
    %1297 = vmatpush1.msra.mxu0 0.0
    %1298 = vmatprep.subr.mxu0 0.0
    %1299 = vmatpush1.msra.mxu0 0.0
    %1300 = vmatprep.subr.mxu0 0.0
    %1301 = vmatpush1.msra.mxu0 0.0
    %1302 = vmatprep.subr.mxu0 0.0
    %1303 = vmatpush1.msra.mxu0 0.0
    %1304 = vmatprep.subr.mxu0 0.0
    %1305 = vmatpush1.msra.mxu0 0.0
    %1306 = vmatprep.subr.mxu0 0.0
    %1307 = vmatpush1.msra.mxu0 0.0
    %1308 = vmatprep.mubr.f32.mxu0 0.0
    %1309 = vmatmul.mubr.f32.gmra.mrb[0].mxu0 %v1242
    %v1310 = vpop.f32.mrb[0].mxu0
    %v1311 = vadd.f32 0.0, %v1310
    %v1312 = vpop.f32.mrb[0].mxu0
    %1313 = vdwg.mxu0
    %v1315 = vsel %vm713, %v801, 0
    %1317 = vmatprep.subr.mxu0 0.0
    %1318 = vmatpush1.msra.mxu0 %v802
    %1319 = vmatprep.subr.mxu0 0.0
    %1320 = vmatpush1.msra.mxu0 0.0
    %1321 = vmatprep.subr.mxu0 0.0
    %1322 = vmatpush1.msra.mxu0 0.0
    %1323 = vmatprep.subr.mxu0 0.0
    %1324 = vmatpush1.msra.mxu0 0.0
    %1325 = vmatprep.subr.mxu0 0.0
    %1326 = vmatpush1.msra.mxu0 0.0
    %1327 = vmatprep.subr.mxu0 0.0
    %1328 = vmatpush1.msra.mxu0 0.0
    %1329 = vmatprep.subr.mxu0 0.0
    %1330 = vmatpush1.msra.mxu0 0.0
    %1331 = vmatprep.subr.mxu0 0.0
    %1332 = vmatpush1.msra.mxu0 0.0
    %1333 = vmatprep.subr.mxu0 0.0
    %1334 = vmatpush1.msra.mxu0 0.0
    %1335 = vmatprep.subr.mxu0 0.0
    %1336 = vmatpush1.msra.mxu0 0.0
    %1337 = vmatprep.subr.mxu0 0.0
    %1338 = vmatpush1.msra.mxu0 0.0
    %1339 = vmatprep.subr.mxu0 0.0
    %1340 = vmatpush1.msra.mxu0 0.0
    %1341 = vmatprep.subr.mxu0 0.0
    %1342 = vmatpush1.msra.mxu0 0.0
    %1343 = vmatprep.subr.mxu0 0.0
    %1344 = vmatpush1.msra.mxu0 0.0
    %1345 = vmatprep.subr.mxu0 0.0
    %1346 = vmatpush1.msra.mxu0 0.0
    %1347 = vmatprep.subr.mxu0 0.0
    %1348 = vmatpush1.msra.mxu0 0.0
    %1349 = vmatprep.subr.mxu0 0.0
    %1350 = vmatpush1.msra.mxu0 0.0
    %1351 = vmatprep.subr.mxu0 0.0
    %1352 = vmatpush1.msra.mxu0 0.0
    %1353 = vmatprep.subr.mxu0 0.0
    %1354 = vmatpush1.msra.mxu0 0.0
    %1355 = vmatprep.subr.mxu0 0.0
    %1356 = vmatpush1.msra.mxu0 0.0
    %1357 = vmatprep.subr.mxu0 0.0
    %1358 = vmatpush1.msra.mxu0 0.0
    %1359 = vmatprep.subr.mxu0 0.0
    %1360 = vmatpush1.msra.mxu0 0.0
    %1361 = vmatprep.subr.mxu0 0.0
    %1362 = vmatpush1.msra.mxu0 0.0
    %1363 = vmatprep.subr.mxu0 0.0
    %1364 = vmatpush1.msra.mxu0 0.0
    %1365 = vmatprep.subr.mxu0 0.0
    %1366 = vmatpush1.msra.mxu0 0.0
    %1367 = vmatprep.subr.mxu0 0.0
    %1368 = vmatpush1.msra.mxu0 0.0
    %1369 = vmatprep.subr.mxu0 0.0
    %1370 = vmatpush1.msra.mxu0 0.0
    %1371 = vmatprep.subr.mxu0 0.0
    %1372 = vmatpush1.msra.mxu0 0.0
    %1373 = vmatprep.subr.mxu0 0.0
    %1374 = vmatpush1.msra.mxu0 0.0
    %1375 = vmatprep.subr.mxu0 0.0
    %1376 = vmatpush1.msra.mxu0 0.0
    %1377 = vmatprep.subr.mxu0 0.0
    %1378 = vmatpush1.msra.mxu0 0.0
    %1379 = vmatprep.subr.mxu0 0.0
    %1380 = vmatpush1.msra.mxu0 0.0
    %1381 = vmatprep.mubr.f32.mxu0 0.0
    %1382 = vmatmul.mubr.f32.gmra.mrb[0].mxu0 %v1315
    %v1383 = vpop.f32.mrb[0].mxu0
    %v1384 = vadd.f32 0.0, %v1383
    %v1385 = vpop.f32.mrb[0].mxu0
    %1386 = vdwg.mxu0
    %1387 = vst.msk [vmem:[#allocation10] sm:$0xff] %vm104, %v873
    %1388 = vst.msk [vmem:[#allocation10 + $0x8] sm:$0xff] %vm104, %v946
    %1389 = vst.msk [vmem:[#allocation10 + $0x10] sm:$0xff] %vm104, %v1019
    %1390 = vst.msk [vmem:[#allocation10 + $0x18] sm:$0xff] %vm104, %v1092
    %1391 = vst.msk [vmem:[#allocation10 + $0x20] sm:$0xff] %vm104, %v1165
    %1392 = vst.msk [vmem:[#allocation10 + $0x28] sm:$0xff] %vm104, %v1238
    %1393 = vst.msk [vmem:[#allocation10 + $0x30] sm:$0xff] %vm104, %v1311
    %1394 = vst.msk [vmem:[#allocation10 + $0x38] sm:$0xff] %vm104, %v1384
    %v1395 = vld [vmem:[#allocation8] sm:$0x3]
    %v1396 = vld [vmem:[#allocation8 + $0x2] sm:$0x3]
    %v1397 = vld [vmem:[#allocation8 + $0x4] sm:$0x3]
    %v1398 = vld [vmem:[#allocation8 + $0x6] sm:$0x3]
    %v1399 = vld [vmem:[#allocation8 + $0x8] sm:$0x3]
    %v1400 = vld [vmem:[#allocation8 + $0xa] sm:$0x3]
    %v1401 = vld [vmem:[#allocation8 + $0xc] sm:$0x3]
    %v1402 = vld [vmem:[#allocation8 + $0xe] sm:$0x3]
    %v1403 = vmul.f32 %v1395, 0.17677669
    %v1404 = vmul.f32 %v1396, 0.17677669
    %v1405 = vmul.f32 %v1397, 0.17677669
    %v1406 = vmul.f32 %v1398, 0.17677669
    %v1407 = vmul.f32 %v1399, 0.17677669
    %v1408 = vmul.f32 %v1400, 0.17677669
    %v1409 = vmul.f32 %v1401, 0.17677669
    %v1410 = vmul.f32 %v1402, 0.17677669
    %v1411 = vld [vmem:[%s5] sm:$0x3]
    %v1412 = vld [vmem:[%s5 + $0x2] sm:$0x3]
    %v1413 = vld [vmem:[%s5 + $0x4] sm:$0x3]
    %v1414 = vld [vmem:[%s5 + $0x6] sm:$0x3]
    %v1415 = vld [vmem:[%s5 + $0x8] sm:$0x3]
    %v1416 = vld [vmem:[%s5 + $0xa] sm:$0x3]
    %v1417 = vld [vmem:[%s5 + $0xc] sm:$0x3]
    %v1418 = vld [vmem:[%s5 + $0xe] sm:$0x3]
    %v1420 = vsel %vm104, %v1403, 0
    %v1423 = vsel %vm104, %v1411, 0
    %1425 = vmatprep.subr.mxu0 0.0
    %1426 = vmatpush1.xpose.msra.mxu0 %v1423
    %1427 = vmatprep.subr.mxu0 0.0
    %1428 = vmatpush1.xpose.msra.mxu0 0.0
    %1429 = vmatprep.subr.mxu0 0.0
    %1430 = vmatpush1.xpose.msra.mxu0 0.0
    %1431 = vmatprep.subr.mxu0 0.0
    %1432 = vmatpush1.xpose.msra.mxu0 0.0
    %1433 = vmatprep.subr.mxu0 0.0
    %1434 = vmatpush1.xpose.msra.mxu0 0.0
    %1435 = vmatprep.subr.mxu0 0.0
    %1436 = vmatpush1.xpose.msra.mxu0 0.0
    %1437 = vmatprep.subr.mxu0 0.0
    %1438 = vmatpush1.xpose.msra.mxu0 0.0
    %1439 = vmatprep.subr.mxu0 0.0
    %1440 = vmatpush1.xpose.msra.mxu0 0.0
    %1441 = vmatprep.subr.mxu0 0.0
    %1442 = vmatpush1.xpose.msra.mxu0 0.0
    %1443 = vmatprep.subr.mxu0 0.0
    %1444 = vmatpush1.xpose.msra.mxu0 0.0
    %1445 = vmatprep.subr.mxu0 0.0
    %1446 = vmatpush1.xpose.msra.mxu0 0.0
    %1447 = vmatprep.subr.mxu0 0.0
    %1448 = vmatpush1.xpose.msra.mxu0 0.0
    %1449 = vmatprep.subr.mxu0 0.0
    %1450 = vmatpush1.xpose.msra.mxu0 0.0
    %1451 = vmatprep.subr.mxu0 0.0
    %1452 = vmatpush1.xpose.msra.mxu0 0.0
    %1453 = vmatprep.subr.mxu0 0.0
    %1454 = vmatpush1.xpose.msra.mxu0 0.0
    %1455 = vmatprep.subr.mxu0 0.0
    %1456 = vmatpush1.xpose.msra.mxu0 0.0
    %1457 = vmatprep.subr.mxu0 0.0
    %1458 = vmatpush1.xpose.msra.mxu0 0.0
    %1459 = vmatprep.subr.mxu0 0.0
    %1460 = vmatpush1.xpose.msra.mxu0 0.0
    %1461 = vmatprep.subr.mxu0 0.0
    %1462 = vmatpush1.xpose.msra.mxu0 0.0
    %1463 = vmatprep.subr.mxu0 0.0
    %1464 = vmatpush1.xpose.msra.mxu0 0.0
    %1465 = vmatprep.subr.mxu0 0.0
    %1466 = vmatpush1.xpose.msra.mxu0 0.0
    %1467 = vmatprep.subr.mxu0 0.0
    %1468 = vmatpush1.xpose.msra.mxu0 0.0
    %1469 = vmatprep.subr.mxu0 0.0
    %1470 = vmatpush1.xpose.msra.mxu0 0.0
    %1471 = vmatprep.subr.mxu0 0.0
    %1472 = vmatpush1.xpose.msra.mxu0 0.0
    %1473 = vmatprep.subr.mxu0 0.0
    %1474 = vmatpush1.xpose.msra.mxu0 0.0
    %1475 = vmatprep.subr.mxu0 0.0
    %1476 = vmatpush1.xpose.msra.mxu0 0.0
    %1477 = vmatprep.subr.mxu0 0.0
    %1478 = vmatpush1.xpose.msra.mxu0 0.0
    %1479 = vmatprep.subr.mxu0 0.0
    %1480 = vmatpush1.xpose.msra.mxu0 0.0
    %1481 = vmatprep.subr.mxu0 0.0
    %1482 = vmatpush1.xpose.msra.mxu0 0.0
    %1483 = vmatprep.subr.mxu0 0.0
    %1484 = vmatpush1.xpose.msra.mxu0 0.0
    %1485 = vmatprep.subr.mxu0 0.0
    %1486 = vmatpush1.xpose.msra.mxu0 0.0
    %1487 = vmatprep.subr.mxu0 0.0
    %1488 = vmatpush1.xpose.msra.mxu0 0.0
    %1489 = vmatprep.mubr.f32.mxu0 0.0
    %1490 = vmatmul.mubr.f32.gmra.mrb[0].mxu0 %v1420
    %v1491 = vpop.f32.mrb[0].mxu0
    %v1492 = vadd.f32 0.0, %v1491
    %v1493 = vpop.f32.mrb[0].mxu0
    %1494 = vdwg.mxu0
    %v1496 = vsel %vm104, %v1404, 0
    %v1499 = vsel %vm104, %v1412, 0
    %1501 = vmatprep.subr.mxu0 0.0
    %1502 = vmatpush1.xpose.msra.mxu0 %v1499
    %1503 = vmatprep.subr.mxu0 0.0
    %1504 = vmatpush1.xpose.msra.mxu0 0.0
    %1505 = vmatprep.subr.mxu0 0.0
    %1506 = vmatpush1.xpose.msra.mxu0 0.0
    %1507 = vmatprep.subr.mxu0 0.0
    %1508 = vmatpush1.xpose.msra.mxu0 0.0
    %1509 = vmatprep.subr.mxu0 0.0
    %1510 = vmatpush1.xpose.msra.mxu0 0.0
    %1511 = vmatprep.subr.mxu0 0.0
    %1512 = vmatpush1.xpose.msra.mxu0 0.0
    %1513 = vmatprep.subr.mxu0 0.0
    %1514 = vmatpush1.xpose.msra.mxu0 0.0
    %1515 = vmatprep.subr.mxu0 0.0
    %1516 = vmatpush1.xpose.msra.mxu0 0.0
    %1517 = vmatprep.subr.mxu0 0.0
    %1518 = vmatpush1.xpose.msra.mxu0 0.0
    %1519 = vmatprep.subr.mxu0 0.0
    %1520 = vmatpush1.xpose.msra.mxu0 0.0
    %1521 = vmatprep.subr.mxu0 0.0
    %1522 = vmatpush1.xpose.msra.mxu0 0.0
    %1523 = vmatprep.subr.mxu0 0.0
    %1524 = vmatpush1.xpose.msra.mxu0 0.0
    %1525 = vmatprep.subr.mxu0 0.0
    %1526 = vmatpush1.xpose.msra.mxu0 0.0
    %1527 = vmatprep.subr.mxu0 0.0
    %1528 = vmatpush1.xpose.msra.mxu0 0.0
    %1529 = vmatprep.subr.mxu0 0.0
    %1530 = vmatpush1.xpose.msra.mxu0 0.0
    %1531 = vmatprep.subr.mxu0 0.0
    %1532 = vmatpush1.xpose.msra.mxu0 0.0
    %1533 = vmatprep.subr.mxu0 0.0
    %1534 = vmatpush1.xpose.msra.mxu0 0.0
    %1535 = vmatprep.subr.mxu0 0.0
    %1536 = vmatpush1.xpose.msra.mxu0 0.0
    %1537 = vmatprep.subr.mxu0 0.0
    %1538 = vmatpush1.xpose.msra.mxu0 0.0
    %1539 = vmatprep.subr.mxu0 0.0
    %1540 = vmatpush1.xpose.msra.mxu0 0.0
    %1541 = vmatprep.subr.mxu0 0.0
    %1542 = vmatpush1.xpose.msra.mxu0 0.0
    %1543 = vmatprep.subr.mxu0 0.0
    %1544 = vmatpush1.xpose.msra.mxu0 0.0
    %1545 = vmatprep.subr.mxu0 0.0
    %1546 = vmatpush1.xpose.msra.mxu0 0.0
    %1547 = vmatprep.subr.mxu0 0.0
    %1548 = vmatpush1.xpose.msra.mxu0 0.0
    %1549 = vmatprep.subr.mxu0 0.0
    %1550 = vmatpush1.xpose.msra.mxu0 0.0
    %1551 = vmatprep.subr.mxu0 0.0
    %1552 = vmatpush1.xpose.msra.mxu0 0.0
    %1553 = vmatprep.subr.mxu0 0.0
    %1554 = vmatpush1.xpose.msra.mxu0 0.0
    %1555 = vmatprep.subr.mxu0 0.0
    %1556 = vmatpush1.xpose.msra.mxu0 0.0
    %1557 = vmatprep.subr.mxu0 0.0
    %1558 = vmatpush1.xpose.msra.mxu0 0.0
    %1559 = vmatprep.subr.mxu0 0.0
    %1560 = vmatpush1.xpose.msra.mxu0 0.0
    %1561 = vmatprep.subr.mxu0 0.0
    %1562 = vmatpush1.xpose.msra.mxu0 0.0
    %1563 = vmatprep.subr.mxu0 0.0
    %1564 = vmatpush1.xpose.msra.mxu0 0.0
    %1565 = vmatprep.mubr.f32.mxu0 0.0
    %1566 = vmatmul.mubr.f32.gmra.mrb[0].mxu0 %v1496
    %v1567 = vpop.f32.mrb[0].mxu0
    %v1568 = vadd.f32 0.0, %v1567
    %v1569 = vpop.f32.mrb[0].mxu0
    %1570 = vdwg.mxu0
    %v1572 = vsel %vm104, %v1405, 0
    %v1575 = vsel %vm104, %v1413, 0
    %1577 = vmatprep.subr.mxu0 0.0
    %1578 = vmatpush1.xpose.msra.mxu0 %v1575
    %1579 = vmatprep.subr.mxu0 0.0
    %1580 = vmatpush1.xpose.msra.mxu0 0.0
    %1581 = vmatprep.subr.mxu0 0.0
    %1582 = vmatpush1.xpose.msra.mxu0 0.0
    %1583 = vmatprep.subr.mxu0 0.0
    %1584 = vmatpush1.xpose.msra.mxu0 0.0
    %1585 = vmatprep.subr.mxu0 0.0
    %1586 = vmatpush1.xpose.msra.mxu0 0.0
    %1587 = vmatprep.subr.mxu0 0.0
    %1588 = vmatpush1.xpose.msra.mxu0 0.0
    %1589 = vmatprep.subr.mxu0 0.0
    %1590 = vmatpush1.xpose.msra.mxu0 0.0
    %1591 = vmatprep.subr.mxu0 0.0
    %1592 = vmatpush1.xpose.msra.mxu0 0.0
    %1593 = vmatprep.subr.mxu0 0.0
    %1594 = vmatpush1.xpose.msra.mxu0 0.0
    %1595 = vmatprep.subr.mxu0 0.0
    %1596 = vmatpush1.xpose.msra.mxu0 0.0
    %1597 = vmatprep.subr.mxu0 0.0
    %1598 = vmatpush1.xpose.msra.mxu0 0.0
    %1599 = vmatprep.subr.mxu0 0.0
    %1600 = vmatpush1.xpose.msra.mxu0 0.0
    %1601 = vmatprep.subr.mxu0 0.0
    %1602 = vmatpush1.xpose.msra.mxu0 0.0
    %1603 = vmatprep.subr.mxu0 0.0
    %1604 = vmatpush1.xpose.msra.mxu0 0.0
    %1605 = vmatprep.subr.mxu0 0.0
    %1606 = vmatpush1.xpose.msra.mxu0 0.0
    %1607 = vmatprep.subr.mxu0 0.0
    %1608 = vmatpush1.xpose.msra.mxu0 0.0
    %1609 = vmatprep.subr.mxu0 0.0
    %1610 = vmatpush1.xpose.msra.mxu0 0.0
    %1611 = vmatprep.subr.mxu0 0.0
    %1612 = vmatpush1.xpose.msra.mxu0 0.0
    %1613 = vmatprep.subr.mxu0 0.0
    %1614 = vmatpush1.xpose.msra.mxu0 0.0
    %1615 = vmatprep.subr.mxu0 0.0
    %1616 = vmatpush1.xpose.msra.mxu0 0.0
    %1617 = vmatprep.subr.mxu0 0.0
    %1618 = vmatpush1.xpose.msra.mxu0 0.0
    %1619 = vmatprep.subr.mxu0 0.0
    %1620 = vmatpush1.xpose.msra.mxu0 0.0
    %1621 = vmatprep.subr.mxu0 0.0
    %1622 = vmatpush1.xpose.msra.mxu0 0.0
    %1623 = vmatprep.subr.mxu0 0.0
    %1624 = vmatpush1.xpose.msra.mxu0 0.0
    %1625 = vmatprep.subr.mxu0 0.0
    %1626 = vmatpush1.xpose.msra.mxu0 0.0
    %1627 = vmatprep.subr.mxu0 0.0
    %1628 = vmatpush1.xpose.msra.mxu0 0.0
    %1629 = vmatprep.subr.mxu0 0.0
    %1630 = vmatpush1.xpose.msra.mxu0 0.0
    %1631 = vmatprep.subr.mxu0 0.0
    %1632 = vmatpush1.xpose.msra.mxu0 0.0
    %1633 = vmatprep.subr.mxu0 0.0
    %1634 = vmatpush1.xpose.msra.mxu0 0.0
    %1635 = vmatprep.subr.mxu0 0.0
    %1636 = vmatpush1.xpose.msra.mxu0 0.0
    %1637 = vmatprep.subr.mxu0 0.0
    %1638 = vmatpush1.xpose.msra.mxu0 0.0
    %1639 = vmatprep.subr.mxu0 0.0
    %1640 = vmatpush1.xpose.msra.mxu0 0.0
    %1641 = vmatprep.mubr.f32.mxu0 0.0
    %1642 = vmatmul.mubr.f32.gmra.mrb[0].mxu0 %v1572
    %v1643 = vpop.f32.mrb[0].mxu0
    %v1644 = vadd.f32 0.0, %v1643
    %v1645 = vpop.f32.mrb[0].mxu0
    %1646 = vdwg.mxu0
    %v1648 = vsel %vm104, %v1406, 0
    %v1651 = vsel %vm104, %v1414, 0
    %1653 = vmatprep.subr.mxu0 0.0
    %1654 = vmatpush1.xpose.msra.mxu0 %v1651
    %1655 = vmatprep.subr.mxu0 0.0
    %1656 = vmatpush1.xpose.msra.mxu0 0.0
    %1657 = vmatprep.subr.mxu0 0.0
    %1658 = vmatpush1.xpose.msra.mxu0 0.0
    %1659 = vmatprep.subr.mxu0 0.0
    %1660 = vmatpush1.xpose.msra.mxu0 0.0
    %1661 = vmatprep.subr.mxu0 0.0
    %1662 = vmatpush1.xpose.msra.mxu0 0.0
    %1663 = vmatprep.subr.mxu0 0.0
    %1664 = vmatpush1.xpose.msra.mxu0 0.0
    %1665 = vmatprep.subr.mxu0 0.0
    %1666 = vmatpush1.xpose.msra.mxu0 0.0
    %1667 = vmatprep.subr.mxu0 0.0
    %1668 = vmatpush1.xpose.msra.mxu0 0.0
    %1669 = vmatprep.subr.mxu0 0.0
    %1670 = vmatpush1.xpose.msra.mxu0 0.0
    %1671 = vmatprep.subr.mxu0 0.0
    %1672 = vmatpush1.xpose.msra.mxu0 0.0
    %1673 = vmatprep.subr.mxu0 0.0
    %1674 = vmatpush1.xpose.msra.mxu0 0.0
    %1675 = vmatprep.subr.mxu0 0.0
    %1676 = vmatpush1.xpose.msra.mxu0 0.0
    %1677 = vmatprep.subr.mxu0 0.0
    %1678 = vmatpush1.xpose.msra.mxu0 0.0
    %1679 = vmatprep.subr.mxu0 0.0
    %1680 = vmatpush1.xpose.msra.mxu0 0.0
    %1681 = vmatprep.subr.mxu0 0.0
    %1682 = vmatpush1.xpose.msra.mxu0 0.0
    %1683 = vmatprep.subr.mxu0 0.0
    %1684 = vmatpush1.xpose.msra.mxu0 0.0
    %1685 = vmatprep.subr.mxu0 0.0
    %1686 = vmatpush1.xpose.msra.mxu0 0.0
    %1687 = vmatprep.subr.mxu0 0.0
    %1688 = vmatpush1.xpose.msra.mxu0 0.0
    %1689 = vmatprep.subr.mxu0 0.0
    %1690 = vmatpush1.xpose.msra.mxu0 0.0
    %1691 = vmatprep.subr.mxu0 0.0
    %1692 = vmatpush1.xpose.msra.mxu0 0.0
    %1693 = vmatprep.subr.mxu0 0.0
    %1694 = vmatpush1.xpose.msra.mxu0 0.0
    %1695 = vmatprep.subr.mxu0 0.0
    %1696 = vmatpush1.xpose.msra.mxu0 0.0
    %1697 = vmatprep.subr.mxu0 0.0
    %1698 = vmatpush1.xpose.msra.mxu0 0.0
    %1699 = vmatprep.subr.mxu0 0.0
    %1700 = vmatpush1.xpose.msra.mxu0 0.0
    %1701 = vmatprep.subr.mxu0 0.0
    %1702 = vmatpush1.xpose.msra.mxu0 0.0
    %1703 = vmatprep.subr.mxu0 0.0
    %1704 = vmatpush1.xpose.msra.mxu0 0.0
    %1705 = vmatprep.subr.mxu0 0.0
    %1706 = vmatpush1.xpose.msra.mxu0 0.0
    %1707 = vmatprep.subr.mxu0 0.0
    %1708 = vmatpush1.xpose.msra.mxu0 0.0
    %1709 = vmatprep.subr.mxu0 0.0
    %1710 = vmatpush1.xpose.msra.mxu0 0.0
    %1711 = vmatprep.subr.mxu0 0.0
    %1712 = vmatpush1.xpose.msra.mxu0 0.0
    %1713 = vmatprep.subr.mxu0 0.0
    %1714 = vmatpush1.xpose.msra.mxu0 0.0
    %1715 = vmatprep.subr.mxu0 0.0
    %1716 = vmatpush1.xpose.msra.mxu0 0.0
    %1717 = vmatprep.mubr.f32.mxu0 0.0
    %1718 = vmatmul.mubr.f32.gmra.mrb[0].mxu0 %v1648
    %v1719 = vpop.f32.mrb[0].mxu0
    %v1720 = vadd.f32 0.0, %v1719
    %v1721 = vpop.f32.mrb[0].mxu0
    %1722 = vdwg.mxu0
    %v1724 = vsel %vm104, %v1407, 0
    %v1727 = vsel %vm104, %v1415, 0
    %1729 = vmatprep.subr.mxu0 0.0
    %1730 = vmatpush1.xpose.msra.mxu0 %v1727
    %1731 = vmatprep.subr.mxu0 0.0
    %1732 = vmatpush1.xpose.msra.mxu0 0.0
    %1733 = vmatprep.subr.mxu0 0.0
    %1734 = vmatpush1.xpose.msra.mxu0 0.0
    %1735 = vmatprep.subr.mxu0 0.0
    %1736 = vmatpush1.xpose.msra.mxu0 0.0
    %1737 = vmatprep.subr.mxu0 0.0
    %1738 = vmatpush1.xpose.msra.mxu0 0.0
    %1739 = vmatprep.subr.mxu0 0.0
    %1740 = vmatpush1.xpose.msra.mxu0 0.0
    %1741 = vmatprep.subr.mxu0 0.0
    %1742 = vmatpush1.xpose.msra.mxu0 0.0
    %1743 = vmatprep.subr.mxu0 0.0
    %1744 = vmatpush1.xpose.msra.mxu0 0.0
    %1745 = vmatprep.subr.mxu0 0.0
    %1746 = vmatpush1.xpose.msra.mxu0 0.0
    %1747 = vmatprep.subr.mxu0 0.0
    %1748 = vmatpush1.xpose.msra.mxu0 0.0
    %1749 = vmatprep.subr.mxu0 0.0
    %1750 = vmatpush1.xpose.msra.mxu0 0.0
    %1751 = vmatprep.subr.mxu0 0.0
    %1752 = vmatpush1.xpose.msra.mxu0 0.0
    %1753 = vmatprep.subr.mxu0 0.0
    %1754 = vmatpush1.xpose.msra.mxu0 0.0
    %1755 = vmatprep.subr.mxu0 0.0
    %1756 = vmatpush1.xpose.msra.mxu0 0.0
    %1757 = vmatprep.subr.mxu0 0.0
    %1758 = vmatpush1.xpose.msra.mxu0 0.0
    %1759 = vmatprep.subr.mxu0 0.0
    %1760 = vmatpush1.xpose.msra.mxu0 0.0
    %1761 = vmatprep.subr.mxu0 0.0
    %1762 = vmatpush1.xpose.msra.mxu0 0.0
    %1763 = vmatprep.subr.mxu0 0.0
    %1764 = vmatpush1.xpose.msra.mxu0 0.0
    %1765 = vmatprep.subr.mxu0 0.0
    %1766 = vmatpush1.xpose.msra.mxu0 0.0
    %1767 = vmatprep.subr.mxu0 0.0
    %1768 = vmatpush1.xpose.msra.mxu0 0.0
    %1769 = vmatprep.subr.mxu0 0.0
    %1770 = vmatpush1.xpose.msra.mxu0 0.0
    %1771 = vmatprep.subr.mxu0 0.0
    %1772 = vmatpush1.xpose.msra.mxu0 0.0
    %1773 = vmatprep.subr.mxu0 0.0
    %1774 = vmatpush1.xpose.msra.mxu0 0.0
    %1775 = vmatprep.subr.mxu0 0.0
    %1776 = vmatpush1.xpose.msra.mxu0 0.0
    %1777 = vmatprep.subr.mxu0 0.0
    %1778 = vmatpush1.xpose.msra.mxu0 0.0
    %1779 = vmatprep.subr.mxu0 0.0
    %1780 = vmatpush1.xpose.msra.mxu0 0.0
    %1781 = vmatprep.subr.mxu0 0.0
    %1782 = vmatpush1.xpose.msra.mxu0 0.0
    %1783 = vmatprep.subr.mxu0 0.0
    %1784 = vmatpush1.xpose.msra.mxu0 0.0
    %1785 = vmatprep.subr.mxu0 0.0
    %1786 = vmatpush1.xpose.msra.mxu0 0.0
    %1787 = vmatprep.subr.mxu0 0.0
    %1788 = vmatpush1.xpose.msra.mxu0 0.0
    %1789 = vmatprep.subr.mxu0 0.0
    %1790 = vmatpush1.xpose.msra.mxu0 0.0
    %1791 = vmatprep.subr.mxu0 0.0
    %1792 = vmatpush1.xpose.msra.mxu0 0.0
    %1793 = vmatprep.mubr.f32.mxu0 0.0
    %1794 = vmatmul.mubr.f32.gmra.mrb[0].mxu0 %v1724
    %v1795 = vpop.f32.mrb[0].mxu0
    %v1796 = vadd.f32 0.0, %v1795
    %v1797 = vpop.f32.mrb[0].mxu0
    %1798 = vdwg.mxu0
    %v1800 = vsel %vm104, %v1408, 0
    %v1803 = vsel %vm104, %v1416, 0
    %1805 = vmatprep.subr.mxu0 0.0
    %1806 = vmatpush1.xpose.msra.mxu0 %v1803
    %1807 = vmatprep.subr.mxu0 0.0
    %1808 = vmatpush1.xpose.msra.mxu0 0.0
    %1809 = vmatprep.subr.mxu0 0.0
    %1810 = vmatpush1.xpose.msra.mxu0 0.0
    %1811 = vmatprep.subr.mxu0 0.0
    %1812 = vmatpush1.xpose.msra.mxu0 0.0
    %1813 = vmatprep.subr.mxu0 0.0
    %1814 = vmatpush1.xpose.msra.mxu0 0.0
    %1815 = vmatprep.subr.mxu0 0.0
    %1816 = vmatpush1.xpose.msra.mxu0 0.0
    %1817 = vmatprep.subr.mxu0 0.0
    %1818 = vmatpush1.xpose.msra.mxu0 0.0
    %1819 = vmatprep.subr.mxu0 0.0
    %1820 = vmatpush1.xpose.msra.mxu0 0.0
    %1821 = vmatprep.subr.mxu0 0.0
    %1822 = vmatpush1.xpose.msra.mxu0 0.0
    %1823 = vmatprep.subr.mxu0 0.0
    %1824 = vmatpush1.xpose.msra.mxu0 0.0
    %1825 = vmatprep.subr.mxu0 0.0
    %1826 = vmatpush1.xpose.msra.mxu0 0.0
    %1827 = vmatprep.subr.mxu0 0.0
    %1828 = vmatpush1.xpose.msra.mxu0 0.0
    %1829 = vmatprep.subr.mxu0 0.0
    %1830 = vmatpush1.xpose.msra.mxu0 0.0
    %1831 = vmatprep.subr.mxu0 0.0
    %1832 = vmatpush1.xpose.msra.mxu0 0.0
    %1833 = vmatprep.subr.mxu0 0.0
    %1834 = vmatpush1.xpose.msra.mxu0 0.0
    %1835 = vmatprep.subr.mxu0 0.0
    %1836 = vmatpush1.xpose.msra.mxu0 0.0
    %1837 = vmatprep.subr.mxu0 0.0
    %1838 = vmatpush1.xpose.msra.mxu0 0.0
    %1839 = vmatprep.subr.mxu0 0.0
    %1840 = vmatpush1.xpose.msra.mxu0 0.0
    %1841 = vmatprep.subr.mxu0 0.0
    %1842 = vmatpush1.xpose.msra.mxu0 0.0
    %1843 = vmatprep.subr.mxu0 0.0
    %1844 = vmatpush1.xpose.msra.mxu0 0.0
    %1845 = vmatprep.subr.mxu0 0.0
    %1846 = vmatpush1.xpose.msra.mxu0 0.0
    %1847 = vmatprep.subr.mxu0 0.0
    %1848 = vmatpush1.xpose.msra.mxu0 0.0
    %1849 = vmatprep.subr.mxu0 0.0
    %1850 = vmatpush1.xpose.msra.mxu0 0.0
    %1851 = vmatprep.subr.mxu0 0.0
    %1852 = vmatpush1.xpose.msra.mxu0 0.0
    %1853 = vmatprep.subr.mxu0 0.0
    %1854 = vmatpush1.xpose.msra.mxu0 0.0
    %1855 = vmatprep.subr.mxu0 0.0
    %1856 = vmatpush1.xpose.msra.mxu0 0.0
    %1857 = vmatprep.subr.mxu0 0.0
    %1858 = vmatpush1.xpose.msra.mxu0 0.0
    %1859 = vmatprep.subr.mxu0 0.0
    %1860 = vmatpush1.xpose.msra.mxu0 0.0
    %1861 = vmatprep.subr.mxu0 0.0
    %1862 = vmatpush1.xpose.msra.mxu0 0.0
    %1863 = vmatprep.subr.mxu0 0.0
    %1864 = vmatpush1.xpose.msra.mxu0 0.0
    %1865 = vmatprep.subr.mxu0 0.0
    %1866 = vmatpush1.xpose.msra.mxu0 0.0
    %1867 = vmatprep.subr.mxu0 0.0
    %1868 = vmatpush1.xpose.msra.mxu0 0.0
    %1869 = vmatprep.mubr.f32.mxu0 0.0
    %1870 = vmatmul.mubr.f32.gmra.mrb[0].mxu0 %v1800
    %v1871 = vpop.f32.mrb[0].mxu0
    %v1872 = vadd.f32 0.0, %v1871
    %v1873 = vpop.f32.mrb[0].mxu0
    %1874 = vdwg.mxu0
    %v1876 = vsel %vm104, %v1409, 0
    %v1879 = vsel %vm104, %v1417, 0
    %1881 = vmatprep.subr.mxu0 0.0
    %1882 = vmatpush1.xpose.msra.mxu0 %v1879
    %1883 = vmatprep.subr.mxu0 0.0
    %1884 = vmatpush1.xpose.msra.mxu0 0.0
    %1885 = vmatprep.subr.mxu0 0.0
    %1886 = vmatpush1.xpose.msra.mxu0 0.0
    %1887 = vmatprep.subr.mxu0 0.0
    %1888 = vmatpush1.xpose.msra.mxu0 0.0
    %1889 = vmatprep.subr.mxu0 0.0
    %1890 = vmatpush1.xpose.msra.mxu0 0.0
    %1891 = vmatprep.subr.mxu0 0.0
    %1892 = vmatpush1.xpose.msra.mxu0 0.0
    %1893 = vmatprep.subr.mxu0 0.0
    %1894 = vmatpush1.xpose.msra.mxu0 0.0
    %1895 = vmatprep.subr.mxu0 0.0
    %1896 = vmatpush1.xpose.msra.mxu0 0.0
    %1897 = vmatprep.subr.mxu0 0.0
    %1898 = vmatpush1.xpose.msra.mxu0 0.0
    %1899 = vmatprep.subr.mxu0 0.0
    %1900 = vmatpush1.xpose.msra.mxu0 0.0
    %1901 = vmatprep.subr.mxu0 0.0
    %1902 = vmatpush1.xpose.msra.mxu0 0.0
    %1903 = vmatprep.subr.mxu0 0.0
    %1904 = vmatpush1.xpose.msra.mxu0 0.0
    %1905 = vmatprep.subr.mxu0 0.0
    %1906 = vmatpush1.xpose.msra.mxu0 0.0
    %1907 = vmatprep.subr.mxu0 0.0
    %1908 = vmatpush1.xpose.msra.mxu0 0.0
    %1909 = vmatprep.subr.mxu0 0.0
    %1910 = vmatpush1.xpose.msra.mxu0 0.0
    %1911 = vmatprep.subr.mxu0 0.0
    %1912 = vmatpush1.xpose.msra.mxu0 0.0
    %1913 = vmatprep.subr.mxu0 0.0
    %1914 = vmatpush1.xpose.msra.mxu0 0.0
    %1915 = vmatprep.subr.mxu0 0.0
    %1916 = vmatpush1.xpose.msra.mxu0 0.0
    %1917 = vmatprep.subr.mxu0 0.0
    %1918 = vmatpush1.xpose.msra.mxu0 0.0
    %1919 = vmatprep.subr.mxu0 0.0
    %1920 = vmatpush1.xpose.msra.mxu0 0.0
    %1921 = vmatprep.subr.mxu0 0.0
    %1922 = vmatpush1.xpose.msra.mxu0 0.0
    %1923 = vmatprep.subr.mxu0 0.0
    %1924 = vmatpush1.xpose.msra.mxu0 0.0
    %1925 = vmatprep.subr.mxu0 0.0
    %1926 = vmatpush1.xpose.msra.mxu0 0.0
    %1927 = vmatprep.subr.mxu0 0.0
    %1928 = vmatpush1.xpose.msra.mxu0 0.0
    %1929 = vmatprep.subr.mxu0 0.0
    %1930 = vmatpush1.xpose.msra.mxu0 0.0
    %1931 = vmatprep.subr.mxu0 0.0
    %1932 = vmatpush1.xpose.msra.mxu0 0.0
    %1933 = vmatprep.subr.mxu0 0.0
    %1934 = vmatpush1.xpose.msra.mxu0 0.0
    %1935 = vmatprep.subr.mxu0 0.0
    %1936 = vmatpush1.xpose.msra.mxu0 0.0
    %1937 = vmatprep.subr.mxu0 0.0
    %1938 = vmatpush1.xpose.msra.mxu0 0.0
    %1939 = vmatprep.subr.mxu0 0.0
    %1940 = vmatpush1.xpose.msra.mxu0 0.0
    %1941 = vmatprep.subr.mxu0 0.0
    %1942 = vmatpush1.xpose.msra.mxu0 0.0
    %1943 = vmatprep.subr.mxu0 0.0
    %1944 = vmatpush1.xpose.msra.mxu0 0.0
    %1945 = vmatprep.mubr.f32.mxu0 0.0
    %1946 = vmatmul.mubr.f32.gmra.mrb[0].mxu0 %v1876
    %v1947 = vpop.f32.mrb[0].mxu0
    %v1948 = vadd.f32 0.0, %v1947
    %v1949 = vpop.f32.mrb[0].mxu0
    %1950 = vdwg.mxu0
    %v1952 = vsel %vm104, %v1410, 0
    %v1955 = vsel %vm104, %v1418, 0
    %1957 = vmatprep.subr.mxu0 0.0
    %1958 = vmatpush1.xpose.msra.mxu0 %v1955
    %1959 = vmatprep.subr.mxu0 0.0
    %1960 = vmatpush1.xpose.msra.mxu0 0.0
    %1961 = vmatprep.subr.mxu0 0.0
    %1962 = vmatpush1.xpose.msra.mxu0 0.0
    %1963 = vmatprep.subr.mxu0 0.0
    %1964 = vmatpush1.xpose.msra.mxu0 0.0
    %1965 = vmatprep.subr.mxu0 0.0
    %1966 = vmatpush1.xpose.msra.mxu0 0.0
    %1967 = vmatprep.subr.mxu0 0.0
    %1968 = vmatpush1.xpose.msra.mxu0 0.0
    %1969 = vmatprep.subr.mxu0 0.0
    %1970 = vmatpush1.xpose.msra.mxu0 0.0
    %1971 = vmatprep.subr.mxu0 0.0
    %1972 = vmatpush1.xpose.msra.mxu0 0.0
    %1973 = vmatprep.subr.mxu0 0.0
    %1974 = vmatpush1.xpose.msra.mxu0 0.0
    %1975 = vmatprep.subr.mxu0 0.0
    %1976 = vmatpush1.xpose.msra.mxu0 0.0
    %1977 = vmatprep.subr.mxu0 0.0
    %1978 = vmatpush1.xpose.msra.mxu0 0.0
    %1979 = vmatprep.subr.mxu0 0.0
    %1980 = vmatpush1.xpose.msra.mxu0 0.0
    %1981 = vmatprep.subr.mxu0 0.0
    %1982 = vmatpush1.xpose.msra.mxu0 0.0
    %1983 = vmatprep.subr.mxu0 0.0
    %1984 = vmatpush1.xpose.msra.mxu0 0.0
    %1985 = vmatprep.subr.mxu0 0.0
    %1986 = vmatpush1.xpose.msra.mxu0 0.0
    %1987 = vmatprep.subr.mxu0 0.0
    %1988 = vmatpush1.xpose.msra.mxu0 0.0
    %1989 = vmatprep.subr.mxu0 0.0
    %1990 = vmatpush1.xpose.msra.mxu0 0.0
    %1991 = vmatprep.subr.mxu0 0.0
    %1992 = vmatpush1.xpose.msra.mxu0 0.0
    %1993 = vmatprep.subr.mxu0 0.0
    %1994 = vmatpush1.xpose.msra.mxu0 0.0
    %1995 = vmatprep.subr.mxu0 0.0
    %1996 = vmatpush1.xpose.msra.mxu0 0.0
    %1997 = vmatprep.subr.mxu0 0.0
    %1998 = vmatpush1.xpose.msra.mxu0 0.0
    %1999 = vmatprep.subr.mxu0 0.0
    %2000 = vmatpush1.xpose.msra.mxu0 0.0
    %2001 = vmatprep.subr.mxu0 0.0
    %2002 = vmatpush1.xpose.msra.mxu0 0.0
    %2003 = vmatprep.subr.mxu0 0.0
    %2004 = vmatpush1.xpose.msra.mxu0 0.0
    %2005 = vmatprep.subr.mxu0 0.0
    %2006 = vmatpush1.xpose.msra.mxu0 0.0
    %2007 = vmatprep.subr.mxu0 0.0
    %2008 = vmatpush1.xpose.msra.mxu0 0.0
    %2009 = vmatprep.subr.mxu0 0.0
    %2010 = vmatpush1.xpose.msra.mxu0 0.0
    %2011 = vmatprep.subr.mxu0 0.0
    %2012 = vmatpush1.xpose.msra.mxu0 0.0
    %2013 = vmatprep.subr.mxu0 0.0
    %2014 = vmatpush1.xpose.msra.mxu0 0.0
    %2015 = vmatprep.subr.mxu0 0.0
    %2016 = vmatpush1.xpose.msra.mxu0 0.0
    %2017 = vmatprep.subr.mxu0 0.0
    %2018 = vmatpush1.xpose.msra.mxu0 0.0
    %2019 = vmatprep.subr.mxu0 0.0
    %2020 = vmatpush1.xpose.msra.mxu0 0.0
    %2021 = vmatprep.mubr.f32.mxu0 0.0
    %2022 = vmatmul.mubr.f32.gmra.mrb[0].mxu0 %v1952
    %v2023 = vpop.f32.mrb[0].mxu0
    %v2024 = vadd.f32 0.0, %v2023
    %v2025 = vpop.f32.mrb[0].mxu0
    %2026 = vdwg.mxu0
    %vm2027 = vcmask 9216
    %v2028 = vsel %vm2027, %v1492, -inf
    %2029 = vmax.xlane.f32.xlu0 %v2028
    %v2030 = vpop.xlane.xlu0 %2029
    %v2031 = vsel %vm2027, %v1568, -inf
    %2032 = vmax.xlane.f32.xlu0 %v2031
    %v2033 = vpop.xlane.xlu0 %2032
    %v2034 = vsel %vm2027, %v1644, -inf
    %2035 = vmax.xlane.f32.xlu0 %v2034
    %v2036 = vpop.xlane.xlu0 %2035
    %v2037 = vsel %vm2027, %v1720, -inf
    %2038 = vmax.xlane.f32.xlu0 %v2037
    %v2039 = vpop.xlane.xlu0 %2038
    %v2040 = vsel %vm2027, %v1796, -inf
    %2041 = vmax.xlane.f32.xlu0 %v2040
    %v2042 = vpop.xlane.xlu0 %2041
    %v2043 = vsel %vm2027, %v1872, -inf
    %2044 = vmax.xlane.f32.xlu0 %v2043
    %v2045 = vpop.xlane.xlu0 %2044
    %v2046 = vsel %vm2027, %v1948, -inf
    %2047 = vmax.xlane.f32.xlu0 %v2046
    %v2048 = vpop.xlane.xlu0 %2047
    %v2049 = vsel %vm2027, %v2024, -inf
    %2050 = vmax.xlane.f32.xlu0 %v2049
    %v2051 = vpop.xlane.xlu0 %2050
    %v2052 = vsub.f32 %v1492, %v2030
    %v2053 = vsub.f32 %v1568, %v2033
    %v2054 = vsub.f32 %v1644, %v2036
    %v2055 = vsub.f32 %v1720, %v2039
    %v2056 = vsub.f32 %v1796, %v2042
    %v2057 = vsub.f32 %v1872, %v2045
    %v2058 = vsub.f32 %v1948, %v2048
    %v2059 = vsub.f32 %v2024, %v2051
    %v2060 = vmul.f32 %v2052, 1.442695
    %v2061 = vpow.pop %v2060
    %v2062 = vmul.f32 %v2053, 1.442695
    %v2063 = vpow.pop %v2062
    %v2064 = vmul.f32 %v2054, 1.442695
    %v2065 = vpow.pop %v2064
    %v2066 = vmul.f32 %v2055, 1.442695
    %v2067 = vpow.pop %v2066
    %v2068 = vmul.f32 %v2056, 1.442695
    %v2069 = vpow.pop %v2068
    %v2070 = vmul.f32 %v2057, 1.442695
    %v2071 = vpow.pop %v2070
    %v2072 = vmul.f32 %v2058, 1.442695
    %v2073 = vpow.pop %v2072
    %v2074 = vmul.f32 %v2059, 1.442695
    %v2075 = vpow.pop %v2074
    %v2076 = vsel %vm2027, %v2061, 0.0
    %2077 = vadd.xlane.f32.xlu0 %v2076
    %v2078 = vpop.xlane.xlu0 %2077
    %v2079 = vsel %vm2027, %v2063, 0.0
    %2080 = vadd.xlane.f32.xlu0 %v2079
    %v2081 = vpop.xlane.xlu0 %2080
    %v2082 = vsel %vm2027, %v2065, 0.0
    %2083 = vadd.xlane.f32.xlu0 %v2082
    %v2084 = vpop.xlane.xlu0 %2083
    %v2085 = vsel %vm2027, %v2067, 0.0
    %2086 = vadd.xlane.f32.xlu0 %v2085
    %v2087 = vpop.xlane.xlu0 %2086
    %v2088 = vsel %vm2027, %v2069, 0.0
    %2089 = vadd.xlane.f32.xlu0 %v2088
    %v2090 = vpop.xlane.xlu0 %2089
    %v2091 = vsel %vm2027, %v2071, 0.0
    %2092 = vadd.xlane.f32.xlu0 %v2091
    %v2093 = vpop.xlane.xlu0 %2092
    %v2094 = vsel %vm2027, %v2073, 0.0
    %2095 = vadd.xlane.f32.xlu0 %v2094
    %v2096 = vpop.xlane.xlu0 %2095
    %v2097 = vsel %vm2027, %v2075, 0.0
    %2098 = vadd.xlane.f32.xlu0 %v2097
    %v2099 = vpop.xlane.xlu0 %2098
    %v2100 = vrcp.pop %v2078
    %v2101 = vrcp.pop %v2081
    %v2102 = vrcp.pop %v2084
    %v2103 = vrcp.pop %v2087
    %v2104 = vrcp.pop %v2090
    %v2105 = vrcp.pop %v2093
    %v2106 = vrcp.pop %v2096
    %v2107 = vrcp.pop %v2099
    %v2108 = vmul.f32 %v2061, %v2100
    %v2109 = vmul.f32 %v2063, %v2101
    %v2110 = vmul.f32 %v2065, %v2102
    %v2111 = vmul.f32 %v2067, %v2103
    %v2112 = vmul.f32 %v2069, %v2104
    %v2113 = vmul.f32 %v2071, %v2105
    %v2114 = vmul.f32 %v2073, %v2106
    %v2115 = vmul.f32 %v2075, %v2107
    %v2116 = vld [vmem:[%s1] sm:$0x3]
    %vm2117 = vcmask 15360
    %v2119 = vsel %vm2117, %v2108, 0
    %vm2121 = vcmask 1041408
    %v2123 = vsel %vm2121, %v2116, 0
    %2125 = vmatprep.subr.mxu0 0.0
    %2126 = vmatpush1.msra.mxu0 %v2123
    %2127 = vmatprep.subr.mxu0 0.0
    %2128 = vmatpush1.msra.mxu0 0.0
    %2129 = vmatprep.subr.mxu0 0.0
    %2130 = vmatpush1.msra.mxu0 0.0
    %2131 = vmatprep.subr.mxu0 0.0
    %2132 = vmatpush1.msra.mxu0 0.0
    %2133 = vmatprep.subr.mxu0 0.0
    %2134 = vmatpush1.msra.mxu0 0.0
    %2135 = vmatprep.subr.mxu0 0.0
    %2136 = vmatpush1.msra.mxu0 0.0
    %2137 = vmatprep.subr.mxu0 0.0
    %2138 = vmatpush1.msra.mxu0 0.0
    %2139 = vmatprep.subr.mxu0 0.0
    %2140 = vmatpush1.msra.mxu0 0.0
    %2141 = vmatprep.subr.mxu0 0.0
    %2142 = vmatpush1.msra.mxu0 0.0
    %2143 = vmatprep.subr.mxu0 0.0
    %2144 = vmatpush1.msra.mxu0 0.0
    %2145 = vmatprep.subr.mxu0 0.0
    %2146 = vmatpush1.msra.mxu0 0.0
    %2147 = vmatprep.subr.mxu0 0.0
    %2148 = vmatpush1.msra.mxu0 0.0
    %2149 = vmatprep.subr.mxu0 0.0
    %2150 = vmatpush1.msra.mxu0 0.0
    %2151 = vmatprep.subr.mxu0 0.0
    %2152 = vmatpush1.msra.mxu0 0.0
    %2153 = vmatprep.subr.mxu0 0.0
    %2154 = vmatpush1.msra.mxu0 0.0
    %2155 = vmatprep.subr.mxu0 0.0
    %2156 = vmatpush1.msra.mxu0 0.0
    %2157 = vmatprep.subr.mxu0 0.0
    %2158 = vmatpush1.msra.mxu0 0.0
    %2159 = vmatprep.subr.mxu0 0.0
    %2160 = vmatpush1.msra.mxu0 0.0
    %2161 = vmatprep.subr.mxu0 0.0
    %2162 = vmatpush1.msra.mxu0 0.0
    %2163 = vmatprep.subr.mxu0 0.0
    %2164 = vmatpush1.msra.mxu0 0.0
    %2165 = vmatprep.subr.mxu0 0.0
    %2166 = vmatpush1.msra.mxu0 0.0
    %2167 = vmatprep.subr.mxu0 0.0
    %2168 = vmatpush1.msra.mxu0 0.0
    %2169 = vmatprep.subr.mxu0 0.0
    %2170 = vmatpush1.msra.mxu0 0.0
    %2171 = vmatprep.subr.mxu0 0.0
    %2172 = vmatpush1.msra.mxu0 0.0
    %2173 = vmatprep.subr.mxu0 0.0
    %2174 = vmatpush1.msra.mxu0 0.0
    %2175 = vmatprep.subr.mxu0 0.0
    %2176 = vmatpush1.msra.mxu0 0.0
    %2177 = vmatprep.subr.mxu0 0.0
    %2178 = vmatpush1.msra.mxu0 0.0
    %2179 = vmatprep.subr.mxu0 0.0
    %2180 = vmatpush1.msra.mxu0 0.0
    %2181 = vmatprep.subr.mxu0 0.0
    %2182 = vmatpush1.msra.mxu0 0.0
    %2183 = vmatprep.subr.mxu0 0.0
    %2184 = vmatpush1.msra.mxu0 0.0
    %2185 = vmatprep.subr.mxu0 0.0
    %2186 = vmatpush1.msra.mxu0 0.0
    %2187 = vmatprep.subr.mxu0 0.0
    %2188 = vmatpush1.msra.mxu0 0.0
    %2189 = vmatprep.mubr.f32.mxu0 0.0
    %2190 = vmatmul.mubr.f32.gmra.mrb[0].mxu0 %v2119
    %v2191 = vpop.f32.mrb[0].mxu0
    %v2192 = vadd.f32 0.0, %v2191
    %v2193 = vpop.f32.mrb[0].mxu0
    %2194 = vdwg.mxu0
    %v2196 = vsel %vm2117, %v2109, 0
    %2198 = vmatprep.subr.mxu0 0.0
    %2199 = vmatpush1.msra.mxu0 %v2123
    %2200 = vmatprep.subr.mxu0 0.0
    %2201 = vmatpush1.msra.mxu0 0.0
    %2202 = vmatprep.subr.mxu0 0.0
    %2203 = vmatpush1.msra.mxu0 0.0
    %2204 = vmatprep.subr.mxu0 0.0
    %2205 = vmatpush1.msra.mxu0 0.0
    %2206 = vmatprep.subr.mxu0 0.0
    %2207 = vmatpush1.msra.mxu0 0.0
    %2208 = vmatprep.subr.mxu0 0.0
    %2209 = vmatpush1.msra.mxu0 0.0
    %2210 = vmatprep.subr.mxu0 0.0
    %2211 = vmatpush1.msra.mxu0 0.0
    %2212 = vmatprep.subr.mxu0 0.0
    %2213 = vmatpush1.msra.mxu0 0.0
    %2214 = vmatprep.subr.mxu0 0.0
    %2215 = vmatpush1.msra.mxu0 0.0
    %2216 = vmatprep.subr.mxu0 0.0
    %2217 = vmatpush1.msra.mxu0 0.0
    %2218 = vmatprep.subr.mxu0 0.0
    %2219 = vmatpush1.msra.mxu0 0.0
    %2220 = vmatprep.subr.mxu0 0.0
    %2221 = vmatpush1.msra.mxu0 0.0
    %2222 = vmatprep.subr.mxu0 0.0
    %2223 = vmatpush1.msra.mxu0 0.0
    %2224 = vmatprep.subr.mxu0 0.0
    %2225 = vmatpush1.msra.mxu0 0.0
    %2226 = vmatprep.subr.mxu0 0.0
    %2227 = vmatpush1.msra.mxu0 0.0
    %2228 = vmatprep.subr.mxu0 0.0
    %2229 = vmatpush1.msra.mxu0 0.0
    %2230 = vmatprep.subr.mxu0 0.0
    %2231 = vmatpush1.msra.mxu0 0.0
    %2232 = vmatprep.subr.mxu0 0.0
    %2233 = vmatpush1.msra.mxu0 0.0
    %2234 = vmatprep.subr.mxu0 0.0
    %2235 = vmatpush1.msra.mxu0 0.0
    %2236 = vmatprep.subr.mxu0 0.0
    %2237 = vmatpush1.msra.mxu0 0.0
    %2238 = vmatprep.subr.mxu0 0.0
    %2239 = vmatpush1.msra.mxu0 0.0
    %2240 = vmatprep.subr.mxu0 0.0
    %2241 = vmatpush1.msra.mxu0 0.0
    %2242 = vmatprep.subr.mxu0 0.0
    %2243 = vmatpush1.msra.mxu0 0.0
    %2244 = vmatprep.subr.mxu0 0.0
    %2245 = vmatpush1.msra.mxu0 0.0
    %2246 = vmatprep.subr.mxu0 0.0
    %2247 = vmatpush1.msra.mxu0 0.0
    %2248 = vmatprep.subr.mxu0 0.0
    %2249 = vmatpush1.msra.mxu0 0.0
    %2250 = vmatprep.subr.mxu0 0.0
    %2251 = vmatpush1.msra.mxu0 0.0
    %2252 = vmatprep.subr.mxu0 0.0
    %2253 = vmatpush1.msra.mxu0 0.0
    %2254 = vmatprep.subr.mxu0 0.0
    %2255 = vmatpush1.msra.mxu0 0.0
    %2256 = vmatprep.subr.mxu0 0.0
    %2257 = vmatpush1.msra.mxu0 0.0
    %2258 = vmatprep.subr.mxu0 0.0
    %2259 = vmatpush1.msra.mxu0 0.0
    %2260 = vmatprep.subr.mxu0 0.0
    %2261 = vmatpush1.msra.mxu0 0.0
    %2262 = vmatprep.mubr.f32.mxu0 0.0
    %2263 = vmatmul.mubr.f32.gmra.mrb[0].mxu0 %v2196
    %v2264 = vpop.f32.mrb[0].mxu0
    %v2265 = vadd.f32 0.0, %v2264
    %v2266 = vpop.f32.mrb[0].mxu0
    %2267 = vdwg.mxu0
    %v2269 = vsel %vm2117, %v2110, 0
    %2271 = vmatprep.subr.mxu0 0.0
    %2272 = vmatpush1.msra.mxu0 %v2123
    %2273 = vmatprep.subr.mxu0 0.0
    %2274 = vmatpush1.msra.mxu0 0.0
    %2275 = vmatprep.subr.mxu0 0.0
    %2276 = vmatpush1.msra.mxu0 0.0
    %2277 = vmatprep.subr.mxu0 0.0
    %2278 = vmatpush1.msra.mxu0 0.0
    %2279 = vmatprep.subr.mxu0 0.0
    %2280 = vmatpush1.msra.mxu0 0.0
    %2281 = vmatprep.subr.mxu0 0.0
    %2282 = vmatpush1.msra.mxu0 0.0
    %2283 = vmatprep.subr.mxu0 0.0
    %2284 = vmatpush1.msra.mxu0 0.0
    %2285 = vmatprep.subr.mxu0 0.0
    %2286 = vmatpush1.msra.mxu0 0.0
    %2287 = vmatprep.subr.mxu0 0.0
    %2288 = vmatpush1.msra.mxu0 0.0
    %2289 = vmatprep.subr.mxu0 0.0
    %2290 = vmatpush1.msra.mxu0 0.0
    %2291 = vmatprep.subr.mxu0 0.0
    %2292 = vmatpush1.msra.mxu0 0.0
    %2293 = vmatprep.subr.mxu0 0.0
    %2294 = vmatpush1.msra.mxu0 0.0
    %2295 = vmatprep.subr.mxu0 0.0
    %2296 = vmatpush1.msra.mxu0 0.0
    %2297 = vmatprep.subr.mxu0 0.0
    %2298 = vmatpush1.msra.mxu0 0.0
    %2299 = vmatprep.subr.mxu0 0.0
    %2300 = vmatpush1.msra.mxu0 0.0
    %2301 = vmatprep.subr.mxu0 0.0
    %2302 = vmatpush1.msra.mxu0 0.0
    %2303 = vmatprep.subr.mxu0 0.0
    %2304 = vmatpush1.msra.mxu0 0.0
    %2305 = vmatprep.subr.mxu0 0.0
    %2306 = vmatpush1.msra.mxu0 0.0
    %2307 = vmatprep.subr.mxu0 0.0
    %2308 = vmatpush1.msra.mxu0 0.0
    %2309 = vmatprep.subr.mxu0 0.0
    %2310 = vmatpush1.msra.mxu0 0.0
    %2311 = vmatprep.subr.mxu0 0.0
    %2312 = vmatpush1.msra.mxu0 0.0
    %2313 = vmatprep.subr.mxu0 0.0
    %2314 = vmatpush1.msra.mxu0 0.0
    %2315 = vmatprep.subr.mxu0 0.0
    %2316 = vmatpush1.msra.mxu0 0.0
    %2317 = vmatprep.subr.mxu0 0.0
    %2318 = vmatpush1.msra.mxu0 0.0
    %2319 = vmatprep.subr.mxu0 0.0
    %2320 = vmatpush1.msra.mxu0 0.0
    %2321 = vmatprep.subr.mxu0 0.0
    %2322 = vmatpush1.msra.mxu0 0.0
    %2323 = vmatprep.subr.mxu0 0.0
    %2324 = vmatpush1.msra.mxu0 0.0
    %2325 = vmatprep.subr.mxu0 0.0
    %2326 = vmatpush1.msra.mxu0 0.0
    %2327 = vmatprep.subr.mxu0 0.0
    %2328 = vmatpush1.msra.mxu0 0.0
    %2329 = vmatprep.subr.mxu0 0.0
    %2330 = vmatpush1.msra.mxu0 0.0
    %2331 = vmatprep.subr.mxu0 0.0
    %2332 = vmatpush1.msra.mxu0 0.0
    %2333 = vmatprep.subr.mxu0 0.0
    %2334 = vmatpush1.msra.mxu0 0.0
    %2335 = vmatprep.mubr.f32.mxu0 0.0
    %2336 = vmatmul.mubr.f32.gmra.mrb[0].mxu0 %v2269
    %v2337 = vpop.f32.mrb[0].mxu0
    %v2338 = vadd.f32 0.0, %v2337
    %v2339 = vpop.f32.mrb[0].mxu0
    %2340 = vdwg.mxu0
    %v2342 = vsel %vm2117, %v2111, 0
    %2344 = vmatprep.subr.mxu0 0.0
    %2345 = vmatpush1.msra.mxu0 %v2123
    %2346 = vmatprep.subr.mxu0 0.0
    %2347 = vmatpush1.msra.mxu0 0.0
    %2348 = vmatprep.subr.mxu0 0.0
    %2349 = vmatpush1.msra.mxu0 0.0
    %2350 = vmatprep.subr.mxu0 0.0
    %2351 = vmatpush1.msra.mxu0 0.0
    %2352 = vmatprep.subr.mxu0 0.0
    %2353 = vmatpush1.msra.mxu0 0.0
    %2354 = vmatprep.subr.mxu0 0.0
    %2355 = vmatpush1.msra.mxu0 0.0
    %2356 = vmatprep.subr.mxu0 0.0
    %2357 = vmatpush1.msra.mxu0 0.0
    %2358 = vmatprep.subr.mxu0 0.0
    %2359 = vmatpush1.msra.mxu0 0.0
    %2360 = vmatprep.subr.mxu0 0.0
    %2361 = vmatpush1.msra.mxu0 0.0
    %2362 = vmatprep.subr.mxu0 0.0
    %2363 = vmatpush1.msra.mxu0 0.0
    %2364 = vmatprep.subr.mxu0 0.0
    %2365 = vmatpush1.msra.mxu0 0.0
    %2366 = vmatprep.subr.mxu0 0.0
    %2367 = vmatpush1.msra.mxu0 0.0
    %2368 = vmatprep.subr.mxu0 0.0
    %2369 = vmatpush1.msra.mxu0 0.0
    %2370 = vmatprep.subr.mxu0 0.0
    %2371 = vmatpush1.msra.mxu0 0.0
    %2372 = vmatprep.subr.mxu0 0.0
    %2373 = vmatpush1.msra.mxu0 0.0
    %2374 = vmatprep.subr.mxu0 0.0
    %2375 = vmatpush1.msra.mxu0 0.0
    %2376 = vmatprep.subr.mxu0 0.0
    %2377 = vmatpush1.msra.mxu0 0.0
    %2378 = vmatprep.subr.mxu0 0.0
    %2379 = vmatpush1.msra.mxu0 0.0
    %2380 = vmatprep.subr.mxu0 0.0
    %2381 = vmatpush1.msra.mxu0 0.0
    %2382 = vmatprep.subr.mxu0 0.0
    %2383 = vmatpush1.msra.mxu0 0.0
    %2384 = vmatprep.subr.mxu0 0.0
    %2385 = vmatpush1.msra.mxu0 0.0
    %2386 = vmatprep.subr.mxu0 0.0
    %2387 = vmatpush1.msra.mxu0 0.0
    %2388 = vmatprep.subr.mxu0 0.0
    %2389 = vmatpush1.msra.mxu0 0.0
    %2390 = vmatprep.subr.mxu0 0.0
    %2391 = vmatpush1.msra.mxu0 0.0
    %2392 = vmatprep.subr.mxu0 0.0
    %2393 = vmatpush1.msra.mxu0 0.0
    %2394 = vmatprep.subr.mxu0 0.0
    %2395 = vmatpush1.msra.mxu0 0.0
    %2396 = vmatprep.subr.mxu0 0.0
    %2397 = vmatpush1.msra.mxu0 0.0
    %2398 = vmatprep.subr.mxu0 0.0
    %2399 = vmatpush1.msra.mxu0 0.0
    %2400 = vmatprep.subr.mxu0 0.0
    %2401 = vmatpush1.msra.mxu0 0.0
    %2402 = vmatprep.subr.mxu0 0.0
    %2403 = vmatpush1.msra.mxu0 0.0
    %2404 = vmatprep.subr.mxu0 0.0
    %2405 = vmatpush1.msra.mxu0 0.0
    %2406 = vmatprep.subr.mxu0 0.0
    %2407 = vmatpush1.msra.mxu0 0.0
    %2408 = vmatprep.mubr.f32.mxu0 0.0
    %2409 = vmatmul.mubr.f32.gmra.mrb[0].mxu0 %v2342
    %v2410 = vpop.f32.mrb[0].mxu0
    %v2411 = vadd.f32 0.0, %v2410
    %v2412 = vpop.f32.mrb[0].mxu0
    %2413 = vdwg.mxu0
    %v2415 = vsel %vm2117, %v2112, 0
    %2417 = vmatprep.subr.mxu0 0.0
    %2418 = vmatpush1.msra.mxu0 %v2123
    %2419 = vmatprep.subr.mxu0 0.0
    %2420 = vmatpush1.msra.mxu0 0.0
    %2421 = vmatprep.subr.mxu0 0.0
    %2422 = vmatpush1.msra.mxu0 0.0
    %2423 = vmatprep.subr.mxu0 0.0
    %2424 = vmatpush1.msra.mxu0 0.0
    %2425 = vmatprep.subr.mxu0 0.0
    %2426 = vmatpush1.msra.mxu0 0.0
    %2427 = vmatprep.subr.mxu0 0.0
    %2428 = vmatpush1.msra.mxu0 0.0
    %2429 = vmatprep.subr.mxu0 0.0
    %2430 = vmatpush1.msra.mxu0 0.0
    %2431 = vmatprep.subr.mxu0 0.0
    %2432 = vmatpush1.msra.mxu0 0.0
    %2433 = vmatprep.subr.mxu0 0.0
    %2434 = vmatpush1.msra.mxu0 0.0
    %2435 = vmatprep.subr.mxu0 0.0
    %2436 = vmatpush1.msra.mxu0 0.0
    %2437 = vmatprep.subr.mxu0 0.0
    %2438 = vmatpush1.msra.mxu0 0.0
    %2439 = vmatprep.subr.mxu0 0.0
    %2440 = vmatpush1.msra.mxu0 0.0
    %2441 = vmatprep.subr.mxu0 0.0
    %2442 = vmatpush1.msra.mxu0 0.0
    %2443 = vmatprep.subr.mxu0 0.0
    %2444 = vmatpush1.msra.mxu0 0.0
    %2445 = vmatprep.subr.mxu0 0.0
    %2446 = vmatpush1.msra.mxu0 0.0
    %2447 = vmatprep.subr.mxu0 0.0
    %2448 = vmatpush1.msra.mxu0 0.0
    %2449 = vmatprep.subr.mxu0 0.0
    %2450 = vmatpush1.msra.mxu0 0.0
    %2451 = vmatprep.subr.mxu0 0.0
    %2452 = vmatpush1.msra.mxu0 0.0
    %2453 = vmatprep.subr.mxu0 0.0
    %2454 = vmatpush1.msra.mxu0 0.0
    %2455 = vmatprep.subr.mxu0 0.0
    %2456 = vmatpush1.msra.mxu0 0.0
    %2457 = vmatprep.subr.mxu0 0.0
    %2458 = vmatpush1.msra.mxu0 0.0
    %2459 = vmatprep.subr.mxu0 0.0
    %2460 = vmatpush1.msra.mxu0 0.0
    %2461 = vmatprep.subr.mxu0 0.0
    %2462 = vmatpush1.msra.mxu0 0.0
    %2463 = vmatprep.subr.mxu0 0.0
    %2464 = vmatpush1.msra.mxu0 0.0
    %2465 = vmatprep.subr.mxu0 0.0
    %2466 = vmatpush1.msra.mxu0 0.0
    %2467 = vmatprep.subr.mxu0 0.0
    %2468 = vmatpush1.msra.mxu0 0.0
    %2469 = vmatprep.subr.mxu0 0.0
    %2470 = vmatpush1.msra.mxu0 0.0
    %2471 = vmatprep.subr.mxu0 0.0
    %2472 = vmatpush1.msra.mxu0 0.0
    %2473 = vmatprep.subr.mxu0 0.0
    %2474 = vmatpush1.msra.mxu0 0.0
    %2475 = vmatprep.subr.mxu0 0.0
    %2476 = vmatpush1.msra.mxu0 0.0
    %2477 = vmatprep.subr.mxu0 0.0
    %2478 = vmatpush1.msra.mxu0 0.0
    %2479 = vmatprep.subr.mxu0 0.0
    %2480 = vmatpush1.msra.mxu0 0.0
    %2481 = vmatprep.mubr.f32.mxu0 0.0
    %2482 = vmatmul.mubr.f32.gmra.mrb[0].mxu0 %v2415
    %v2483 = vpop.f32.mrb[0].mxu0
    %v2484 = vadd.f32 0.0, %v2483
    %v2485 = vpop.f32.mrb[0].mxu0
    %2486 = vdwg.mxu0
    %v2488 = vsel %vm2117, %v2113, 0
    %2490 = vmatprep.subr.mxu0 0.0
    %2491 = vmatpush1.msra.mxu0 %v2123
    %2492 = vmatprep.subr.mxu0 0.0
    %2493 = vmatpush1.msra.mxu0 0.0
    %2494 = vmatprep.subr.mxu0 0.0
    %2495 = vmatpush1.msra.mxu0 0.0
    %2496 = vmatprep.subr.mxu0 0.0
    %2497 = vmatpush1.msra.mxu0 0.0
    %2498 = vmatprep.subr.mxu0 0.0
    %2499 = vmatpush1.msra.mxu0 0.0
    %2500 = vmatprep.subr.mxu0 0.0
    %2501 = vmatpush1.msra.mxu0 0.0
    %2502 = vmatprep.subr.mxu0 0.0
    %2503 = vmatpush1.msra.mxu0 0.0
    %2504 = vmatprep.subr.mxu0 0.0
    %2505 = vmatpush1.msra.mxu0 0.0
    %2506 = vmatprep.subr.mxu0 0.0
    %2507 = vmatpush1.msra.mxu0 0.0
    %2508 = vmatprep.subr.mxu0 0.0
    %2509 = vmatpush1.msra.mxu0 0.0
    %2510 = vmatprep.subr.mxu0 0.0
    %2511 = vmatpush1.msra.mxu0 0.0
    %2512 = vmatprep.subr.mxu0 0.0
    %2513 = vmatpush1.msra.mxu0 0.0
    %2514 = vmatprep.subr.mxu0 0.0
    %2515 = vmatpush1.msra.mxu0 0.0
    %2516 = vmatprep.subr.mxu0 0.0
    %2517 = vmatpush1.msra.mxu0 0.0
    %2518 = vmatprep.subr.mxu0 0.0
    %2519 = vmatpush1.msra.mxu0 0.0
    %2520 = vmatprep.subr.mxu0 0.0
    %2521 = vmatpush1.msra.mxu0 0.0
    %2522 = vmatprep.subr.mxu0 0.0
    %2523 = vmatpush1.msra.mxu0 0.0
    %2524 = vmatprep.subr.mxu0 0.0
    %2525 = vmatpush1.msra.mxu0 0.0
    %2526 = vmatprep.subr.mxu0 0.0
    %2527 = vmatpush1.msra.mxu0 0.0
    %2528 = vmatprep.subr.mxu0 0.0
    %2529 = vmatpush1.msra.mxu0 0.0
    %2530 = vmatprep.subr.mxu0 0.0
    %2531 = vmatpush1.msra.mxu0 0.0
    %2532 = vmatprep.subr.mxu0 0.0
    %2533 = vmatpush1.msra.mxu0 0.0
    %2534 = vmatprep.subr.mxu0 0.0
    %2535 = vmatpush1.msra.mxu0 0.0
    %2536 = vmatprep.subr.mxu0 0.0
    %2537 = vmatpush1.msra.mxu0 0.0
    %2538 = vmatprep.subr.mxu0 0.0
    %2539 = vmatpush1.msra.mxu0 0.0
    %2540 = vmatprep.subr.mxu0 0.0
    %2541 = vmatpush1.msra.mxu0 0.0
    %2542 = vmatprep.subr.mxu0 0.0
    %2543 = vmatpush1.msra.mxu0 0.0
    %2544 = vmatprep.subr.mxu0 0.0
    %2545 = vmatpush1.msra.mxu0 0.0
    %2546 = vmatprep.subr.mxu0 0.0
    %2547 = vmatpush1.msra.mxu0 0.0
    %2548 = vmatprep.subr.mxu0 0.0
    %2549 = vmatpush1.msra.mxu0 0.0
    %2550 = vmatprep.subr.mxu0 0.0
    %2551 = vmatpush1.msra.mxu0 0.0
    %2552 = vmatprep.subr.mxu0 0.0
    %2553 = vmatpush1.msra.mxu0 0.0
    %2554 = vmatprep.mubr.f32.mxu0 0.0
    %2555 = vmatmul.mubr.f32.gmra.mrb[0].mxu0 %v2488
    %v2556 = vpop.f32.mrb[0].mxu0
    %v2557 = vadd.f32 0.0, %v2556
    %v2558 = vpop.f32.mrb[0].mxu0
    %2559 = vdwg.mxu0
    %v2561 = vsel %vm2117, %v2114, 0
    %2563 = vmatprep.subr.mxu0 0.0
    %2564 = vmatpush1.msra.mxu0 %v2123
    %2565 = vmatprep.subr.mxu0 0.0
    %2566 = vmatpush1.msra.mxu0 0.0
    %2567 = vmatprep.subr.mxu0 0.0
    %2568 = vmatpush1.msra.mxu0 0.0
    %2569 = vmatprep.subr.mxu0 0.0
    %2570 = vmatpush1.msra.mxu0 0.0
    %2571 = vmatprep.subr.mxu0 0.0
    %2572 = vmatpush1.msra.mxu0 0.0
    %2573 = vmatprep.subr.mxu0 0.0
    %2574 = vmatpush1.msra.mxu0 0.0
    %2575 = vmatprep.subr.mxu0 0.0
    %2576 = vmatpush1.msra.mxu0 0.0
    %2577 = vmatprep.subr.mxu0 0.0
    %2578 = vmatpush1.msra.mxu0 0.0
    %2579 = vmatprep.subr.mxu0 0.0
    %2580 = vmatpush1.msra.mxu0 0.0
    %2581 = vmatprep.subr.mxu0 0.0
    %2582 = vmatpush1.msra.mxu0 0.0
    %2583 = vmatprep.subr.mxu0 0.0
    %2584 = vmatpush1.msra.mxu0 0.0
    %2585 = vmatprep.subr.mxu0 0.0
    %2586 = vmatpush1.msra.mxu0 0.0
    %2587 = vmatprep.subr.mxu0 0.0
    %2588 = vmatpush1.msra.mxu0 0.0
    %2589 = vmatprep.subr.mxu0 0.0
    %2590 = vmatpush1.msra.mxu0 0.0
    %2591 = vmatprep.subr.mxu0 0.0
    %2592 = vmatpush1.msra.mxu0 0.0
    %2593 = vmatprep.subr.mxu0 0.0
    %2594 = vmatpush1.msra.mxu0 0.0
    %2595 = vmatprep.subr.mxu0 0.0
    %2596 = vmatpush1.msra.mxu0 0.0
    %2597 = vmatprep.subr.mxu0 0.0
    %2598 = vmatpush1.msra.mxu0 0.0
    %2599 = vmatprep.subr.mxu0 0.0
    %2600 = vmatpush1.msra.mxu0 0.0
    %2601 = vmatprep.subr.mxu0 0.0
    %2602 = vmatpush1.msra.mxu0 0.0
    %2603 = vmatprep.subr.mxu0 0.0
    %2604 = vmatpush1.msra.mxu0 0.0
    %2605 = vmatprep.subr.mxu0 0.0
    %2606 = vmatpush1.msra.mxu0 0.0
    %2607 = vmatprep.subr.mxu0 0.0
    %2608 = vmatpush1.msra.mxu0 0.0
    %2609 = vmatprep.subr.mxu0 0.0
    %2610 = vmatpush1.msra.mxu0 0.0
    %2611 = vmatprep.subr.mxu0 0.0
    %2612 = vmatpush1.msra.mxu0 0.0
    %2613 = vmatprep.subr.mxu0 0.0
    %2614 = vmatpush1.msra.mxu0 0.0
    %2615 = vmatprep.subr.mxu0 0.0
    %2616 = vmatpush1.msra.mxu0 0.0
    %2617 = vmatprep.subr.mxu0 0.0
    %2618 = vmatpush1.msra.mxu0 0.0
    %2619 = vmatprep.subr.mxu0 0.0
    %2620 = vmatpush1.msra.mxu0 0.0
    %2621 = vmatprep.subr.mxu0 0.0
    %2622 = vmatpush1.msra.mxu0 0.0
    %2623 = vmatprep.subr.mxu0 0.0
    %2624 = vmatpush1.msra.mxu0 0.0
    %2625 = vmatprep.subr.mxu0 0.0
    %2626 = vmatpush1.msra.mxu0 0.0
    %2627 = vmatprep.mubr.f32.mxu0 0.0
    %2628 = vmatmul.mubr.f32.gmra.mrb[0].mxu0 %v2561
    %v2629 = vpop.f32.mrb[0].mxu0
    %v2630 = vadd.f32 0.0, %v2629
    %v2631 = vpop.f32.mrb[0].mxu0
    %2632 = vdwg.mxu0
    %v2634 = vsel %vm2117, %v2115, 0
    %2636 = vmatprep.subr.mxu0 0.0
    %2637 = vmatpush1.msra.mxu0 %v2123
    %2638 = vmatprep.subr.mxu0 0.0
    %2639 = vmatpush1.msra.mxu0 0.0
    %2640 = vmatprep.subr.mxu0 0.0
    %2641 = vmatpush1.msra.mxu0 0.0
    %2642 = vmatprep.subr.mxu0 0.0
    %2643 = vmatpush1.msra.mxu0 0.0
    %2644 = vmatprep.subr.mxu0 0.0
    %2645 = vmatpush1.msra.mxu0 0.0
    %2646 = vmatprep.subr.mxu0 0.0
    %2647 = vmatpush1.msra.mxu0 0.0
    %2648 = vmatprep.subr.mxu0 0.0
    %2649 = vmatpush1.msra.mxu0 0.0
    %2650 = vmatprep.subr.mxu0 0.0
    %2651 = vmatpush1.msra.mxu0 0.0
    %2652 = vmatprep.subr.mxu0 0.0
    %2653 = vmatpush1.msra.mxu0 0.0
    %2654 = vmatprep.subr.mxu0 0.0
    %2655 = vmatpush1.msra.mxu0 0.0
    %2656 = vmatprep.subr.mxu0 0.0
    %2657 = vmatpush1.msra.mxu0 0.0
    %2658 = vmatprep.subr.mxu0 0.0
    %2659 = vmatpush1.msra.mxu0 0.0
    %2660 = vmatprep.subr.mxu0 0.0
    %2661 = vmatpush1.msra.mxu0 0.0
    %2662 = vmatprep.subr.mxu0 0.0
    %2663 = vmatpush1.msra.mxu0 0.0
    %2664 = vmatprep.subr.mxu0 0.0
    %2665 = vmatpush1.msra.mxu0 0.0
    %2666 = vmatprep.subr.mxu0 0.0
    %2667 = vmatpush1.msra.mxu0 0.0
    %2668 = vmatprep.subr.mxu0 0.0
    %2669 = vmatpush1.msra.mxu0 0.0
    %2670 = vmatprep.subr.mxu0 0.0
    %2671 = vmatpush1.msra.mxu0 0.0
    %2672 = vmatprep.subr.mxu0 0.0
    %2673 = vmatpush1.msra.mxu0 0.0
    %2674 = vmatprep.subr.mxu0 0.0
    %2675 = vmatpush1.msra.mxu0 0.0
    %2676 = vmatprep.subr.mxu0 0.0
    %2677 = vmatpush1.msra.mxu0 0.0
    %2678 = vmatprep.subr.mxu0 0.0
    %2679 = vmatpush1.msra.mxu0 0.0
    %2680 = vmatprep.subr.mxu0 0.0
    %2681 = vmatpush1.msra.mxu0 0.0
    %2682 = vmatprep.subr.mxu0 0.0
    %2683 = vmatpush1.msra.mxu0 0.0
    %2684 = vmatprep.subr.mxu0 0.0
    %2685 = vmatpush1.msra.mxu0 0.0
    %2686 = vmatprep.subr.mxu0 0.0
    %2687 = vmatpush1.msra.mxu0 0.0
    %2688 = vmatprep.subr.mxu0 0.0
    %2689 = vmatpush1.msra.mxu0 0.0
    %2690 = vmatprep.subr.mxu0 0.0
    %2691 = vmatpush1.msra.mxu0 0.0
    %2692 = vmatprep.subr.mxu0 0.0
    %2693 = vmatpush1.msra.mxu0 0.0
    %2694 = vmatprep.subr.mxu0 0.0
    %2695 = vmatpush1.msra.mxu0 0.0
    %2696 = vmatprep.subr.mxu0 0.0
    %2697 = vmatpush1.msra.mxu0 0.0
    %2698 = vmatprep.subr.mxu0 0.0
    %2699 = vmatpush1.msra.mxu0 0.0
    %2700 = vmatprep.mubr.f32.mxu0 0.0
    %2701 = vmatmul.mubr.f32.gmra.mrb[0].mxu0 %v2634
    %v2702 = vpop.f32.mrb[0].mxu0
    %v2703 = vadd.f32 0.0, %v2702
    %v2704 = vpop.f32.mrb[0].mxu0
    %2705 = vdwg.mxu0
    %2706 = vst [vmem:[#allocation11] sm:$0x3] %v2192
    %2707 = vst [vmem:[#allocation11 + $0x2] sm:$0x3] %v2265
    %2708 = vst [vmem:[#allocation11 + $0x4] sm:$0x3] %v2338
    %2709 = vst [vmem:[#allocation11 + $0x6] sm:$0x3] %v2411
    %2710 = vst [vmem:[#allocation11 + $0x8] sm:$0x3] %v2484
    %2711 = vst [vmem:[#allocation11 + $0xa] sm:$0x3] %v2557
    %2712 = vst [vmem:[#allocation11 + $0xc] sm:$0x3] %v2630
    %2713 = vst [vmem:[#allocation11 + $0xe] sm:$0x3] %v2703
    // Predicated region
    $region42: #{tpu_custom_call.1} parent=1 // pred_check
      _
    $region43: #{tpu_custom_call.1} parent=1 // pred_check_branch
      %2715 = sbr.rel (0) target = $region45
    $region44: #{tpu_custom_call.1} parent=1 // pred_region
      %s2717 = ssub.s32 1024, 1024
      %2718 = vsyncadd [#allocation4], %s2717
      %s2719 = sshll.u32 [#allocation10], 4
      %s2720 = int_to_ptr.vmem [resolvable:$true] %s2719
      %2725 = dma.vmem_to_hbm [thread:$0]  %s2720, 1024, %s6, [#allocation4], 128, 128, 8
    $region45: #{tpu_custom_call.1} parent=1 // pred_fallthru
      _
    // Predicated region
    $region46: #{tpu_custom_call.1} parent=1 // pred_check
      _
    $region47: #{tpu_custom_call.1} parent=1 // pred_check_branch
      %2727 = sbr.rel (0) target = $region49
    $region48: #{tpu_custom_call.1} parent=1 // pred_region
      %s2729 = ssub.s32 256, 256
      %2730 = vsyncadd [#allocation12], %s2729
      %s2731 = sshll.u32 [#allocation11], 4
      %s2732 = int_to_ptr.vmem [resolvable:$true] %s2731
      %2737 = dma.vmem_to_hbm [thread:$0]  %s2732, 256, %s7, [#allocation12], 32, 32, 2
    $region49: #{tpu_custom_call.1} parent=1 // pred_fallthru
      _
    // Predicated region
    $region50: #{tpu_custom_call.1} parent=1 // pred_check
      _
    $region51: #{tpu_custom_call.1} parent=1 // pred_check_branch
      %2739 = sbr.rel (0) target = $region53
    $region52: #{tpu_custom_call.1} parent=1 // pred_region
      %2740 = dma.done [#allocation4], 1024
    $region53: #{tpu_custom_call.1} parent=1 // pred_fallthru
      _
    // Predicated region
    $region54: #{tpu_custom_call.1} parent=1 // pred_check
      _
    $region55: #{tpu_custom_call.1} parent=1 // pred_check_branch
      %2742 = sbr.rel (0) target = $region57
    $region56: #{tpu_custom_call.1} parent=1 // pred_region
      %2743 = dma.done [#allocation12], 256
    $region57: #{tpu_custom_call.1} parent=1 // pred_fallthru
      _
    %2744 = vsyncpa [#allocation3], 1
    %2745 = vsyncpa [#allocation6], 1
    %2746 = vsyncpa [#allocation9], 1
    %2747 = vsyncpa [#allocation4], 1
    %2748 = vsyncpa [#allocation12], 1

</llo_original>
